<compile_context>
chip_gen: v7x
topology: tpu7x:2x2x1
jax: 0.10.0
libtpu: 0.0.40
codegen_flags: <defaults>
</compile_context>

<pallas_src>
import math
import jax
import jax.numpy as jnp
from jax.experimental import pallas as pl
from jax.experimental.pallas import tpu as pltpu

# ----------------------------- "cfg" constants -------------------------------
FOCAL = (1000.0, 1000.0)
PRINCPT = (8.0, 8.0)
CAMERA_3D_SIZE = 2.5
INPUT_IMG_SHAPE = (16, 16)
K_VALUE = math.sqrt(FOCAL[0] * FOCAL[1] * CAMERA_3D_SIZE * CAMERA_3D_SIZE /
                    (INPUT_IMG_SHAPE[0] * INPUT_IMG_SHAPE[1]))

# ----------------------------- synthetic SMPL sizes --------------------------
NUM_VERTS = 432          # small synthetic mesh (real SMPL = 6890)
VP = 512                 # vertex count padded to a multiple of 128 (lane dim)
NUM_JOINTS = 24          # SMPL kinematic joints
NUM_BETAS = 10
NUM_REG_JOINTS = 30      # external smpl.joint_regressor rows
JP = 128                 # regressed joints padded to 128 lanes (lane-dense)
ROOT_JOINT_IDX = 0
PARENTS = [-1, 0, 0, 0, 1, 2, 3, 4, 5, 6, 7, 8, 9, 9, 9, 12, 13, 14, 16, 17,
           18, 19, 20, 21]
C_IN = 4
C_FEAT = 32
POSE_FEAT = 9 * (NUM_JOINTS - 1)                # 207
DIRS_ROWS = NUM_BETAS + POSE_FEAT + 1           # 218 (betas | pose_feat | 1)
HEAD_DIM = NUM_JOINTS * 6 + NUM_BETAS + 3       # 144 + 10 + 3 = 157
HEAD_PAD = 256                                  # lane-dense head output


# ============================ Pallas kernels ==================================
def _backbone_kernel(x_ref, cw_ref, cb_ref, hw_ref, hb_ref, o_ref):
    # 1x1 conv as matmul + ReLU, global average pool, head linear — fused.
    x = x_ref[0]                                                 # (HW, C_IN)
    feat = jnp.dot(x, cw_ref[...],
                   preferred_element_type=jnp.float32) + cb_ref[...]
    feat = jnp.maximum(feat, 0.0)                                # (HW, C_FEAT)
    pooled = jnp.mean(feat, axis=0, keepdims=True)               # (1, C_FEAT)
    o_ref[0] = jnp.dot(pooled, hw_ref[...],
                       preferred_element_type=jnp.float32) + hb_ref[...]


def backbone_head(x3d, conv_w, conv_b, head_w_pad, head_b_pad):
    B, HW, C = x3d.shape
    cf = conv_w.shape[1]
    hp = head_w_pad.shape[1]
    out = pl.pallas_call(
        _backbone_kernel,
        out_shape=jax.ShapeDtypeStruct((B, 1, hp), jnp.float32),
        grid=(B,),
        in_specs=[pl.BlockSpec((1, HW, C), lambda b: (b, 0, 0)),
                  pl.BlockSpec((C, cf), lambda b: (0, 0)),
                  pl.BlockSpec((1, cf), lambda b: (0, 0)),
                  pl.BlockSpec((cf, hp), lambda b: (0, 0)),
                  pl.BlockSpec((1, hp), lambda b: (0, 0))],
        out_specs=pl.BlockSpec((1, 1, hp), lambda b: (b, 0, 0)),
        compiler_params=pltpu.CompilerParams(
            dimension_semantics=("parallel",)),
    )(x3d, conv_w, conv_b, head_w_pad, head_b_pad)
    return out[:, 0, :]                                          # (B, HEAD_PAD)


def _smpl_kernel(feat_ref, dirs_ref, lbsT_ref, m_ref, jrT_ref, cam_ref,
                 mesh_ref, joints_ref):
    # 1) shape + pose blend-shapes + template in ONE matmul
    #    (coordinate-major, verts on lanes, padded to VP)
    vp = jnp.dot(feat_ref[0], dirs_ref[...],
                 preferred_element_type=jnp.float32)              # (1, 3*VP)
    vx = vp[:, 0:VP]
    vy = vp[:, VP:2 * VP]
    vz = vp[:, 2 * VP:3 * VP]                                     # (1, VP) each

    # 2) LBS skinning: one (12,24)@(24,VP) matmul gives the per-vertex
    #    3x4 transforms S[4c+k, v] = sum_j A[j,c,k] * w[v,j]
    s = jnp.dot(m_ref[0], lbsT_ref[...],
                preferred_element_type=jnp.float32)               # (12, VP)
    rows = []
    for c in range(3):
        rows.append(s[4 * c + 0:4 * c + 1, :] * vx +
                    s[4 * c + 1:4 * c + 2, :] * vy +
                    s[4 * c + 2:4 * c + 3, :] * vz +
                    s[4 * c + 3:4 * c + 4, :])
    mesh = jnp.concatenate(rows, axis=0)                          # (3, VP)

    # 3) external joint regression (padded verts/joints have zero rows/cols)
    jc = jnp.dot(mesh, jrT_ref[...],
                 preferred_element_type=jnp.float32)              # (3, JP)

    # 4) perspective projection (uses joints BEFORE root-centering, as in ref)
    cam = cam_ref[0]                                              # (1, 3)
    zt = jc[2:3, :] + cam[:, 2:3] + 1e-4
    x = (jc[0:1, :] + cam[:, 0:1]) / zt * FOCAL[0] + PRINCPT[0]
    y = (jc[1:2, :] + cam[:, 1:2]) / zt * FOCAL[1] + PRINCPT[1]

    # 5) root-centering; pack joint_cam (3 rows) + joint_proj (2 rows) into a
    #    single lane-dense output slab -> one unmasked store / one DMA.
    root = jc[:, ROOT_JOINT_IDX:ROOT_JOINT_IDX + 1]               # (3, 1)
    joints_ref[0] = jnp.concatenate([jc - root, x, y], axis=0)    # (5, JP)
    mesh_ref[0] = mesh - root


def smpl_fused(feat3, dirs_cm, lbsT, m_all, jregT, cam_t3):
    B = feat3.shape[0]
    return pl.pallas_call(
        _smpl_kernel,
        out_shape=(jax.ShapeDtypeStruct((B, 3, VP), jnp.float32),
                   jax.ShapeDtypeStruct((B, 5, JP), jnp.float32)),
        grid=(B,),
        in_specs=[pl.BlockSpec((1, 1, DIRS_ROWS), lambda b: (b, 0, 0)),
                  pl.BlockSpec((DIRS_ROWS, 3 * VP), lambda b: (0, 0)),
                  pl.BlockSpec((NUM_JOINTS, VP), lambda b: (0, 0)),
                  pl.BlockSpec((1, 12, NUM_JOINTS), lambda b: (b, 0, 0)),
                  pl.BlockSpec((VP, JP), lambda b: (0, 0)),
                  pl.BlockSpec((1, 1, 3), lambda b: (b, 0, 0))],
        out_specs=(pl.BlockSpec((1, 3, VP), lambda b: (b, 0, 0)),
                   pl.BlockSpec((1, 5, JP), lambda b: (b, 0, 0))),
        compiler_params=pltpu.CompilerParams(
            dimension_semantics=("parallel",)),
    )(feat3, dirs_cm, lbsT, m_all, jregT, cam_t3)


# ============================ plain-JAX glue ==================================
def rot6d_to_rotmat(x6):                      # (N, 6) -> (N, 3, 3)
    x = x6.reshape(-1, 3, 2)
    a1, a2 = x[:, :, 0], x[:, :, 1]
    b1 = a1 / (jnp.linalg.norm(a1, axis=-1, keepdims=True) + 1e-8)
    d = jnp.sum(b1 * a2, axis=-1, keepdims=True)
    b2u = a2 - d * b1
    b2 = b2u / (jnp.linalg.norm(b2u, axis=-1, keepdims=True) + 1e-8)
    b3 = jnp.cross(b1, b2)
    return jnp.stack([b1, b2, b3], axis=-1)


def rotmat_to_axis_angle(R):                  # (N, 3, 3) -> (N, 3)
    # TODO(synk): near angle~pi the skew-symmetric extraction degenerates;
    # the reference uses a quaternion-based conversion for those rotations.
    tr = R[:, 0, 0] + R[:, 1, 1] + R[:, 2, 2]
    angle = jnp.arccos(jnp.clip((tr - 1.0) * 0.5, -1.0, 1.0))
    rx = R[:, 2, 1] - R[:, 1, 2]
    ry = R[:, 0, 2] - R[:, 2, 0]
    rz = R[:, 1, 0] - R[:, 0, 1]
    sin_a = jnp.sin(angle)
    denom = jnp.where(jnp.abs(sin_a) < 1e-6, 1.0, 2.0 * sin_a)
    axis = jnp.stack([rx, ry, rz], axis=-1) / denom[:, None]
    return axis * angle[:, None]


def rigid_transform(rot_mats, joints):
    # 24-joint forward kinematics (tiny sequential chain), relative transforms.
    B = rot_mats.shape[0]
    rel = jnp.concatenate(
        [joints[:, :1], joints[:, 1:] - joints[:, jnp.array(PARENTS[1:])]],
        axis=1)
    top = jnp.concatenate([rot_mats, rel[..., None]], axis=-1)    # (B,24,3,4)
    bottom = jnp.broadcast_to(
        jnp.array([0.0, 0.0, 0.0, 1.0], jnp.float32), (B, NUM_JOINTS, 1, 4))
    T = jnp.concatenate([top, bottom], axis=-2)                   # (B,24,4,4)
    chain = [T[:, 0]]
    for i in range(1, NUM_JOINTS):
        chain.append(chain[PARENTS[i]] @ T[:, i])
    G = jnp.stack(chain, axis=1)
    corr = jnp.einsum('bjik,bjk->bji', G[:, :, :3, :3], joints)
    A = G.at[:, :, :3, 3].add(-corr)
    return A                                                      # (B,24,4,4)


# ============================ parameters ======================================
def init_params(key):
    ks = jax.random.split(key, 9)
    p = {}
    p["conv_w"] = 0.1 * jax.random.normal(ks[0], (C_IN, C_FEAT), jnp.float32)
    p["conv_b"] = jnp.zeros((1, C_FEAT), jnp.float32)
    head_w = 0.1 * jax.random.normal(ks[1], (C_FEAT, HEAD_DIM), jnp.float32)
    head_b = 0.01 * jax.random.normal(ks[2], (1, HEAD_DIM), jnp.float32)
    p["head_w_pad"] = jnp.pad(head_w, ((0, 0), (0, HEAD_PAD - HEAD_DIM)))
    p["head_b_pad"] = jnp.pad(head_b, ((0, 0), (0, HEAD_PAD - HEAD_DIM)))

    v_template = 0.3 * jax.random.normal(ks[3], (NUM_VERTS, 3), jnp.float32)
    shapedirs = 0.01 * jax.random.normal(
        ks[4], (NUM_BETAS, NUM_VERTS * 3), jnp.float32)
    posedirs = 0.001 * jax.random.normal(
        ks[5], (POSE_FEAT, NUM_VERTS * 3), jnp.float32)
    jr = jax.random.uniform(ks[6], (NUM_JOINTS, NUM_VERTS), jnp.float32)
    j_regressor_smpl = jr / jnp.sum(jr, axis=1, keepdims=True)
    lw = jax.random.uniform(ks[7], (NUM_VERTS, NUM_JOINTS), jnp.float32)
    lbs_weights = lw / jnp.sum(lw, axis=1, keepdims=True)
    jr2 = jax.random.uniform(ks[8], (NUM_REG_JOINTS, NUM_VERTS), jnp.float32)
    joint_regressor = jr2 / jnp.sum(jr2, axis=1, keepdims=True)

    def cm_pad(flat_vert_major):          # (R, V*3) -> (R, 3*VP), coord-major
        r = flat_vert_major.shape[0]
        a = flat_vert_major.reshape(r, NUM_VERTS, 3).transpose(0, 2, 1)
        a = jnp.pad(a, ((0, 0), (0, 0), (0, VP - NUM_VERTS)))
        return a.reshape(r, 3 * VP)

    # single blend-shape matrix: rows = [shapedirs | posedirs | template]
    p["dirs_cm"] = jnp.concatenate(
        [cm_pad(shapedirs), cm_pad(posedirs),
         cm_pad(v_template.reshape(1, NUM_VERTS * 3))], axis=0)   # (218, 3*VP)
    p["lbs_weights_T"] = jnp.pad(lbs_weights.T,
                                 ((0, 0), (0, VP - NUM_VERTS)))   # (24, VP)
    # external regressor, padded on both verts (rows) and joints (lanes)
    p["joint_regressor_T"] = jnp.pad(
        joint_regressor.T,
        ((0, VP - NUM_VERTS), (0, JP - NUM_REG_JOINTS)))          # (VP, 128)

    # Fold SMPL joint regression onto betas: joints0 = J_template + betas@J_dirs
    sd3 = shapedirs.reshape(NUM_BETAS, NUM_VERTS, 3)
    p["j_dirs"] = jnp.einsum('jv,kvc->kjc', j_regressor_smpl,
                             sd3).reshape(NUM_BETAS, NUM_JOINTS * 3)
    p["j_template"] = j_regressor_smpl @ v_template               # (24, 3)
    return p


# ============================ full forward ====================================
def model_forward(params, inp_img):
    # inp_img: (B, C, H, W), NCHW as in the PyTorch reference
    B, C, H, W = inp_img.shape
    x3d = jnp.transpose(inp_img, (0, 2, 3, 1)).reshape(B, H * W, C)

    head_out = backbone_head(x3d, params["conv_w"], params["conv_b"],
                             params["head_w_pad"],
                             params["head_b_pad"])[:, :HEAD_DIM]

    pose6d = head_out[:, :NUM_JOINTS * 6]
    smpl_shape = head_out[:, NUM_JOINTS * 6:NUM_JOINTS * 6 + NUM_BETAS]
    cam_param = head_out[:, NUM_JOINTS * 6 + NUM_BETAS:]

    rot_mats = rot6d_to_rotmat(pose6d.reshape(-1, 6)).reshape(
        B, NUM_JOINTS, 3, 3)
    smpl_pose = rotmat_to_axis_angle(rot_mats.reshape(-1, 3, 3)).reshape(B, -1)

    ident = jnp.eye(3, dtype=jnp.float32)
    pose_feat = (rot_mats[:, 1:] - ident).reshape(B, POSE_FEAT)

    # SMPL kinematic joints from betas (tiny matmul; regressor folded at init)
    joints0 = params["j_template"][None] + (
        smpl_shape @ params["j_dirs"]).reshape(B, NUM_JOINTS, 3)

    a_mats = rigid_transform(rot_mats, joints0)                   # (B,24,4,4)
    # M[b, 4c+k, j] = A[b, j, c, k] so skinning is one (12,24)@(24,VP) matmul
    m_all = jnp.transpose(a_mats[:, :, :3, :],
                          (0, 2, 3, 1)).reshape(B, 12, NUM_JOINTS)

    # camera translation (stable sigmoid)
    t_xy = cam_param[:, 0:2]
    t_z = K_VALUE * jax.nn.sigmoid(cam_param[:, 2:3])
    cam_t = jnp.concatenate([t_xy, t_z], axis=1)                  # (B, 3)

    # homogeneous blend-shape feature: [betas | pose_feat | 1]
    feat = jnp.concatenate(
        [smpl_shape, pose_feat, jnp.ones((B, 1), jnp.float32)],
        axis=1).reshape(B, 1, DIRS_ROWS)

    mesh_cm, joints_cm = smpl_fused(
        feat, params["dirs_cm"], params["lbs_weights_T"], m_all,
        params["joint_regressor_T"], cam_t.reshape(B, 1, 3))

    mesh_cam = jnp.transpose(mesh_cm[:, :, :NUM_VERTS], (0, 2, 1))  # (B,V,3)
    joint_cam = jnp.transpose(
        joints_cm[:, 0:3, :NUM_REG_JOINTS], (0, 2, 1))              # (B,J,3)
    joint_proj = jnp.transpose(
        joints_cm[:, 3:5, :NUM_REG_JOINTS], (0, 2, 1))              # (B,J,2)
    return mesh_cam, joint_cam, joint_proj, smpl_pose, smpl_shape


if __name__ == "__main__":
    key = jax.random.PRNGKey(0)
    k_params, k_img = jax.random.split(key)
    params = init_params(k_params)
    inp_img = jax.random.normal(k_img, (2, C_IN, 16, 16), jnp.float32)

    outs = jax.jit(model_forward)(params, inp_img)
    outs = jax.block_until_ready(outs)
    mesh_cam, joint_cam, joint_proj, smpl_pose, smpl_shape = outs

    assert mesh_cam.shape == (2, NUM_VERTS, 3)
    assert joint_cam.shape == (2, NUM_REG_JOINTS, 3)
    assert joint_proj.shape == (2, NUM_REG_JOINTS, 2)
    assert smpl_pose.shape == (2, NUM_JOINTS * 3)
    assert smpl_shape.shape == (2, NUM_BETAS)
    assert all(bool(jnp.all(jnp.isfinite(o))) for o in outs)
    print("KERNEL_OK")
</pallas_src>

<mosaic_0001>
module attributes {stable_mosaic.version = 11 : i64} {
  func.func @_backbone_kernel(%arg0: i32, %arg1: memref<1x256x4xf32, #tpu.memory_space<vmem>>, %arg2: memref<4x32xf32, #tpu.memory_space<vmem>>, %arg3: memref<1x32xf32, #tpu.memory_space<vmem>>, %arg4: memref<32x256xf32, #tpu.memory_space<vmem>>, %arg5: memref<1x256xf32, #tpu.memory_space<vmem>>, %arg6: memref<1x1x256xf32, #tpu.memory_space<vmem>>) attributes {dimension_semantics = [#tpu.dimension_semantics<parallel>], iteration_bounds = array<i64: 2>, scalar_prefetch = 0 : i64, scratch_operands = 0 : i64, tpu.core_type = #tpu.core_type<tc>, window_params = [{transform_indices = @transform_0, window_bounds = array<i64: 1, 256, 4>}, {pipeline_mode = #tpu.pipeline_mode<synchronous>, transform_indices = @transform_1, window_bounds = array<i64: 4, 32>}, {pipeline_mode = #tpu.pipeline_mode<synchronous>, transform_indices = @transform_2, window_bounds = array<i64: 1, 32>}, {pipeline_mode = #tpu.pipeline_mode<synchronous>, transform_indices = @transform_3, window_bounds = array<i64: 32, 256>}, {pipeline_mode = #tpu.pipeline_mode<synchronous>, transform_indices = @transform_4, window_bounds = array<i64: 1, 256>}, {transform_indices = @transform_5, window_bounds = array<i64: 1, 1, 256>}]} {
    %c0 = arith.constant 0 : index
    %c0_0 = arith.constant 0 : index
    %c0_1 = arith.constant 0 : index
    %0 = vector.load %arg1[%c0, %c0_0, %c0_1] : memref<1x256x4xf32, #tpu.memory_space<vmem>>, vector<1x256x4xf32>
    %1 = vector.shape_cast %0 : vector<1x256x4xf32> to vector<256x4xf32>
    %c0_2 = arith.constant 0 : index
    %c0_3 = arith.constant 0 : index
    %2 = vector.load %arg2[%c0_2, %c0_3] : memref<4x32xf32, #tpu.memory_space<vmem>>, vector<4x32xf32>
    %cst = arith.constant dense<0.000000e+00> : vector<256x32xf32>
    %3 = tpu.matmul %1, %2, %cst {dimension_numbers = #tpu.dot_dimension_numbers<[1], [0], [0], [1], [0, 0, 1, 1], [], []>} : vector<256x4xf32>, vector<4x32xf32>, vector<256x32xf32> -> vector<256x32xf32>
    %c0_4 = arith.constant 0 : index
    %c0_5 = arith.constant 0 : index
    %4 = vector.load %arg3[%c0_4, %c0_5] : memref<1x32xf32, #tpu.memory_space<vmem>>, vector<1x32xf32>
    %5 = vector.broadcast %4 : vector<1x32xf32> to vector<256x32xf32>
    %6 = arith.addf %3, %5 : vector<256x32xf32>
    %cst_6 = arith.constant 0.000000e+00 : f32
    %7 = vector.broadcast %cst_6 : f32 to vector<256x32xf32>
    %8 = arith.maximumf %6, %7 : vector<256x32xf32>
    %cst_7 = arith.constant dense<0.000000e+00> : vector<32xf32>
    %9 = vector.multi_reduction <add>, %8, %cst_7 [0] : vector<256x32xf32> to vector<32xf32>
    %10 = vector.shape_cast %9 : vector<32xf32> to vector<1x32xf32>
    %cst_8 = arith.constant 2.560000e+02 : f32
    %11 = vector.broadcast %cst_8 : f32 to vector<1x32xf32>
    %12 = arith.divf %10, %11 : vector<1x32xf32>
    %c0_9 = arith.constant 0 : index
    %c0_10 = arith.constant 0 : index
    %13 = vector.load %arg4[%c0_9, %c0_10] : memref<32x256xf32, #tpu.memory_space<vmem>>, vector<32x256xf32>
    %cst_11 = arith.constant dense<0.000000e+00> : vector<1x256xf32>
    %14 = tpu.matmul %12, %13, %cst_11 {dimension_numbers = #tpu.dot_dimension_numbers<[1], [0], [0], [1], [0, 0, 1, 1], [], []>} : vector<1x32xf32>, vector<32x256xf32>, vector<1x256xf32> -> vector<1x256xf32>
    %c0_12 = arith.constant 0 : index
    %c0_13 = arith.constant 0 : index
    %15 = vector.load %arg5[%c0_12, %c0_13] : memref<1x256xf32, #tpu.memory_space<vmem>>, vector<1x256xf32>
    %16 = arith.addf %14, %15 : vector<1x256xf32>
    %c0_14 = arith.constant 0 : index
    %c0_15 = arith.constant 0 : index
    %c0_16 = arith.constant 0 : index
    %17 = vector.load %arg6[%c0_14, %c0_15, %c0_16] : memref<1x1x256xf32, #tpu.memory_space<vmem>>, vector<1x1x256xf32>
    %18 = vector.shape_cast %17 : vector<1x1x256xf32> to vector<1x256xf32>
    %19 = vector.shape_cast %16 : vector<1x256xf32> to vector<1x1x256xf32>
    tpu.vector_store %arg6[%c0_14, %c0_15, %c0_16], %19 {strides = array<i32>} : memref<1x1x256xf32, #tpu.memory_space<vmem>>, vector<1x1x256xf32>,
    return
  }
  func.func @transform_0(%arg0: i32) -> (i32, i32, i32) {
    %c0_i32 = arith.constant 0 : i32
    %c0_i32_0 = arith.constant 0 : i32
    %c0_i32_1 = arith.constant 0 : i32
    return %arg0, %c0_i32, %c0_i32_0 : i32, i32, i32
  }
  func.func @transform_1(%arg0: i32) -> (i32, i32) {
    %c0_i32 = arith.constant 0 : i32
    %c0_i32_0 = arith.constant 0 : i32
    %c0_i32_1 = arith.constant 0 : i32
    return %c0_i32, %c0_i32_0 : i32, i32
  }
  func.func @transform_2(%arg0: i32) -> (i32, i32) {
    %c0_i32 = arith.constant 0 : i32
    %c0_i32_0 = arith.constant 0 : i32
    %c0_i32_1 = arith.constant 0 : i32
    return %c0_i32, %c0_i32_0 : i32, i32
  }
  func.func @transform_3(%arg0: i32) -> (i32, i32) {
    %c0_i32 = arith.constant 0 : i32
    %c0_i32_0 = arith.constant 0 : i32
    %c0_i32_1 = arith.constant 0 : i32
    return %c0_i32, %c0_i32_0 : i32, i32
  }
  func.func @transform_4(%arg0: i32) -> (i32, i32) {
    %c0_i32 = arith.constant 0 : i32
    %c0_i32_0 = arith.constant 0 : i32
    %c0_i32_1 = arith.constant 0 : i32
    return %c0_i32, %c0_i32_0 : i32, i32
  }
  func.func @transform_5(%arg0: i32) -> (i32, i32, i32) {
    %c0_i32 = arith.constant 0 : i32
    %c0_i32_0 = arith.constant 0 : i32
    %c0_i32_1 = arith.constant 0 : i32
    return %arg0, %c0_i32, %c0_i32_0 : i32, i32, i32
  }
}

module attributes {stable_mosaic.version = 11 : i64} {
  func.func @_smpl_kernel(%arg0: i32, %arg1: memref<1x1x218xf32, #tpu.memory_space<vmem>>, %arg2: memref<218x1536xf32, #tpu.memory_space<vmem>>, %arg3: memref<24x512xf32, #tpu.memory_space<vmem>>, %arg4: memref<1x12x24xf32, #tpu.memory_space<vmem>>, %arg5: memref<512x128xf32, #tpu.memory_space<vmem>>, %arg6: memref<1x1x3xf32, #tpu.memory_space<vmem>>, %arg7: memref<1x3x512xf32, #tpu.memory_space<vmem>>, %arg8: memref<1x5x128xf32, #tpu.memory_space<vmem>>) attributes {dimension_semantics = [#tpu.dimension_semantics<parallel>], iteration_bounds = array<i64: 2>, scalar_prefetch = 0 : i64, scratch_operands = 0 : i64, tpu.core_type = #tpu.core_type<tc>, window_params = [{transform_indices = @transform_0, window_bounds = array<i64: 1, 1, 218>}, {pipeline_mode = #tpu.pipeline_mode<synchronous>, transform_indices = @transform_1, window_bounds = array<i64: 218, 1536>}, {pipeline_mode = #tpu.pipeline_mode<synchronous>, transform_indices = @transform_2, window_bounds = array<i64: 24, 512>}, {transform_indices = @transform_3, window_bounds = array<i64: 1, 12, 24>}, {pipeline_mode = #tpu.pipeline_mode<synchronous>, transform_indices = @transform_4, window_bounds = array<i64: 512, 128>}, {transform_indices = @transform_5, window_bounds = array<i64: 1, 1, 3>}, {transform_indices = @transform_6, window_bounds = array<i64: 1, 3, 512>}, {transform_indices = @transform_7, window_bounds = array<i64: 1, 5, 128>}]} {
    %c0 = arith.constant 0 : index
    %c0_0 = arith.constant 0 : index
    %c0_1 = arith.constant 0 : index
    %0 = vector.load %arg1[%c0, %c0_0, %c0_1] : memref<1x1x218xf32, #tpu.memory_space<vmem>>, vector<1x1x218xf32>
    %1 = vector.shape_cast %0 : vector<1x1x218xf32> to vector<1x218xf32>
    %c0_2 = arith.constant 0 : index
    %c0_3 = arith.constant 0 : index
    %2 = vector.load %arg2[%c0_2, %c0_3] : memref<218x1536xf32, #tpu.memory_space<vmem>>, vector<218x1536xf32>
    %cst = arith.constant dense<0.000000e+00> : vector<1x1536xf32>
    %3 = tpu.matmul %1, %2, %cst {dimension_numbers = #tpu.dot_dimension_numbers<[1], [0], [0], [1], [0, 0, 1, 1], [], []>} : vector<1x218xf32>, vector<218x1536xf32>, vector<1x1536xf32> -> vector<1x1536xf32>
    %4 = vector.extract_strided_slice %3 {offsets = [0, 0], sizes = [1, 512], strides = [1, 1]} : vector<1x1536xf32> to vector<1x512xf32>
    %5 = vector.extract_strided_slice %3 {offsets = [0, 512], sizes = [1, 512], strides = [1, 1]} : vector<1x1536xf32> to vector<1x512xf32>
    %6 = vector.extract_strided_slice %3 {offsets = [0, 1024], sizes = [1, 512], strides = [1, 1]} : vector<1x1536xf32> to vector<1x512xf32>
    %c0_4 = arith.constant 0 : index
    %c0_5 = arith.constant 0 : index
    %c0_6 = arith.constant 0 : index
    %7 = vector.load %arg4[%c0_4, %c0_5, %c0_6] : memref<1x12x24xf32, #tpu.memory_space<vmem>>, vector<1x12x24xf32>
    %8 = vector.shape_cast %7 : vector<1x12x24xf32> to vector<12x24xf32>
    %c0_7 = arith.constant 0 : index
    %c0_8 = arith.constant 0 : index
    %9 = vector.load %arg3[%c0_7, %c0_8] : memref<24x512xf32, #tpu.memory_space<vmem>>, vector<24x512xf32>
    %cst_9 = arith.constant dense<0.000000e+00> : vector<12x512xf32>
    %10 = tpu.matmul %8, %9, %cst_9 {dimension_numbers = #tpu.dot_dimension_numbers<[1], [0], [0], [1], [0, 0, 1, 1], [], []>} : vector<12x24xf32>, vector<24x512xf32>, vector<12x512xf32> -> vector<12x512xf32>
    %11 = vector.extract_strided_slice %10 {offsets = [0, 0], sizes = [1, 512], strides = [1, 1]} : vector<12x512xf32> to vector<1x512xf32>
    %12 = arith.mulf %11, %4 : vector<1x512xf32>
    %13 = vector.extract_strided_slice %10 {offsets = [1, 0], sizes = [1, 512], strides = [1, 1]} : vector<12x512xf32> to vector<1x512xf32>
    %14 = arith.mulf %13, %5 : vector<1x512xf32>
    %15 = arith.addf %12, %14 : vector<1x512xf32>
    %16 = vector.extract_strided_slice %10 {offsets = [2, 0], sizes = [1, 512], strides = [1, 1]} : vector<12x512xf32> to vector<1x512xf32>
    %17 = arith.mulf %16, %6 : vector<1x512xf32>
    %18 = arith.addf %15, %17 : vector<1x512xf32>
    %19 = vector.extract_strided_slice %10 {offsets = [3, 0], sizes = [1, 512], strides = [1, 1]} : vector<12x512xf32> to vector<1x512xf32>
    %20 = arith.addf %18, %19 : vector<1x512xf32>
    %21 = vector.extract_strided_slice %10 {offsets = [4, 0], sizes = [1, 512], strides = [1, 1]} : vector<12x512xf32> to vector<1x512xf32>
    %22 = arith.mulf %21, %4 : vector<1x512xf32>
    %23 = vector.extract_strided_slice %10 {offsets = [5, 0], sizes = [1, 512], strides = [1, 1]} : vector<12x512xf32> to vector<1x512xf32>
    %24 = arith.mulf %23, %5 : vector<1x512xf32>
    %25 = arith.addf %22, %24 : vector<1x512xf32>
    %26 = vector.extract_strided_slice %10 {offsets = [6, 0], sizes = [1, 512], strides = [1, 1]} : vector<12x512xf32> to vector<1x512xf32>
    %27 = arith.mulf %26, %6 : vector<1x512xf32>
    %28 = arith.addf %25, %27 : vector<1x512xf32>
    %29 = vector.extract_strided_slice %10 {offsets = [7, 0], sizes = [1, 512], strides = [1, 1]} : vector<12x512xf32> to vector<1x512xf32>
    %30 = arith.addf %28, %29 : vector<1x512xf32>
    %31 = vector.extract_strided_slice %10 {offsets = [8, 0], sizes = [1, 512], strides = [1, 1]} : vector<12x512xf32> to vector<1x512xf32>
    %32 = arith.mulf %31, %4 : vector<1x512xf32>
    %33 = vector.extract_strided_slice %10 {offsets = [9, 0], sizes = [1, 512], strides = [1, 1]} : vector<12x512xf32> to vector<1x512xf32>
    %34 = arith.mulf %33, %5 : vector<1x512xf32>
    %35 = arith.addf %32, %34 : vector<1x512xf32>
    %36 = vector.extract_strided_slice %10 {offsets = [10, 0], sizes = [1, 512], strides = [1, 1]} : vector<12x512xf32> to vector<1x512xf32>
    %37 = arith.mulf %36, %6 : vector<1x512xf32>
    %38 = arith.addf %35, %37 : vector<1x512xf32>
    %39 = vector.extract_strided_slice %10 {offsets = [11, 0], sizes = [1, 512], strides = [1, 1]} : vector<12x512xf32> to vector<1x512xf32>
    %40 = arith.addf %38, %39 : vector<1x512xf32>
    %41 = tpu.concatenate %20, %30, %40 in 0 : vector<1x512xf32>, vector<1x512xf32>, vector<1x512xf32> -> vector<3x512xf32>
    %c0_10 = arith.constant 0 : index
    %c0_11 = arith.constant 0 : index
    %42 = vector.load %arg5[%c0_10, %c0_11] : memref<512x128xf32, #tpu.memory_space<vmem>>, vector<512x128xf32>
    %cst_12 = arith.constant dense<0.000000e+00> : vector<3x128xf32>
    %43 = tpu.matmul %41, %42, %cst_12 {dimension_numbers = #tpu.dot_dimension_numbers<[1], [0], [0], [1], [0, 0, 1, 1], [], []>} : vector<3x512xf32>, vector<512x128xf32>, vector<3x128xf32> -> vector<3x128xf32>
    %c0_13 = arith.constant 0 : index
    %c0_14 = arith.constant 0 : index
    %c0_15 = arith.constant 0 : index
    %44 = vector.load %arg6[%c0_13, %c0_14, %c0_15] : memref<1x1x3xf32, #tpu.memory_space<vmem>>, vector<1x1x3xf32>
    %45 = vector.shape_cast %44 : vector<1x1x3xf32> to vector<1x3xf32>
    %46 = vector.extract_strided_slice %43 {offsets = [2, 0], sizes = [1, 128], strides = [1, 1]} : vector<3x128xf32> to vector<1x128xf32>
    %47 = vector.extract_strided_slice %45 {offsets = [0, 2], sizes = [1, 1], strides = [1, 1]} : vector<1x3xf32> to vector<1x1xf32>
    %48 = vector.broadcast %47 : vector<1x1xf32> to vector<1x128xf32>
    %49 = arith.addf %46, %48 : vector<1x128xf32>
    %cst_16 = arith.constant 9.99999974E-5 : f32
    %50 = vector.broadcast %cst_16 : f32 to vector<1x128xf32>
    %51 = arith.addf %49, %50 : vector<1x128xf32>
    %52 = vector.extract_strided_slice %43 {offsets = [0, 0], sizes = [1, 128], strides = [1, 1]} : vector<3x128xf32> to vector<1x128xf32>
    %53 = vector.extract_strided_slice %45 {offsets = [0, 0], sizes = [1, 1], strides = [1, 1]} : vector<1x3xf32> to vector<1x1xf32>
    %54 = vector.broadcast %53 : vector<1x1xf32> to vector<1x128xf32>
    %55 = arith.addf %52, %54 : vector<1x128xf32>
    %56 = arith.divf %55, %51 : vector<1x128xf32>
    %cst_17 = arith.constant 1.000000e+03 : f32
    %57 = vector.broadcast %cst_17 : f32 to vector<1x128xf32>
    %58 = arith.mulf %56, %57 : vector<1x128xf32>
    %cst_18 = arith.constant 8.000000e+00 : f32
    %59 = vector.broadcast %cst_18 : f32 to vector<1x128xf32>
    %60 = arith.addf %58, %59 : vector<1x128xf32>
    %61 = vector.extract_strided_slice %43 {offsets = [1, 0], sizes = [1, 128], strides = [1, 1]} : vector<3x128xf32> to vector<1x128xf32>
    %62 = vector.extract_strided_slice %45 {offsets = [0, 1], sizes = [1, 1], strides = [1, 1]} : vector<1x3xf32> to vector<1x1xf32>
    %63 = vector.broadcast %62 : vector<1x1xf32> to vector<1x128xf32>
    %64 = arith.addf %61, %63 : vector<1x128xf32>
    %65 = arith.divf %64, %51 : vector<1x128xf32>
    %cst_19 = arith.constant 1.000000e+03 : f32
    %66 = vector.broadcast %cst_19 : f32 to vector<1x128xf32>
    %67 = arith.mulf %65, %66 : vector<1x128xf32>
    %cst_20 = arith.constant 8.000000e+00 : f32
    %68 = vector.broadcast %cst_20 : f32 to vector<1x128xf32>
    %69 = arith.addf %67, %68 : vector<1x128xf32>
    %70 = vector.extract_strided_slice %43 {offsets = [0, 0], sizes = [3, 1], strides = [1, 1]} : vector<3x128xf32> to vector<3x1xf32>
    %71 = vector.broadcast %70 : vector<3x1xf32> to vector<3x128xf32>
    %72 = arith.subf %43, %71 : vector<3x128xf32>
    %73 = tpu.concatenate %72, %60, %69 in 0 : vector<3x128xf32>, vector<1x128xf32>, vector<1x128xf32> -> vector<5x128xf32>
    %c0_21 = arith.constant 0 : index
    %c0_22 = arith.constant 0 : index
    %c0_23 = arith.constant 0 : index
    %74 = vector.load %arg8[%c0_21, %c0_22, %c0_23] : memref<1x5x128xf32, #tpu.memory_space<vmem>>, vector<1x5x128xf32>
    %75 = vector.shape_cast %74 : vector<1x5x128xf32> to vector<5x128xf32>
    %76 = vector.shape_cast %73 : vector<5x128xf32> to vector<1x5x128xf32>
    tpu.vector_store %arg8[%c0_21, %c0_22, %c0_23], %76 {strides = array<i32>} : memref<1x5x128xf32, #tpu.memory_space<vmem>>, vector<1x5x128xf32>,
    %77 = vector.broadcast %70 : vector<3x1xf32> to vector<3x512xf32>
    %78 = arith.subf %41, %77 : vector<3x512xf32>
    %c0_24 = arith.constant 0 : index
    %c0_25 = arith.constant 0 : index
    %c0_26 = arith.constant 0 : index
    %79 = vector.load %arg7[%c0_24, %c0_25, %c0_26] : memref<1x3x512xf32, #tpu.memory_space<vmem>>, vector<1x3x512xf32>
    %80 = vector.shape_cast %79 : vector<1x3x512xf32> to vector<3x512xf32>
    %81 = vector.shape_cast %78 : vector<3x512xf32> to vector<1x3x512xf32>
    tpu.vector_store %arg7[%c0_24, %c0_25, %c0_26], %81 {strides = array<i32>} : memref<1x3x512xf32, #tpu.memory_space<vmem>>, vector<1x3x512xf32>,
    return
  }
  func.func @transform_0(%arg0: i32) -> (i32, i32, i32) {
    %c0_i32 = arith.constant 0 : i32
    %c0_i32_0 = arith.constant 0 : i32
    %c0_i32_1 = arith.constant 0 : i32
    return %arg0, %c0_i32, %c0_i32_0 : i32, i32, i32
  }
  func.func @transform_1(%arg0: i32) -> (i32, i32) {
    %c0_i32 = arith.constant 0 : i32
    %c0_i32_0 = arith.constant 0 : i32
    %c0_i32_1 = arith.constant 0 : i32
    return %c0_i32, %c0_i32_0 : i32, i32
  }
  func.func @transform_2(%arg0: i32) -> (i32, i32) {
    %c0_i32 = arith.constant 0 : i32
    %c0_i32_0 = arith.constant 0 : i32
    %c0_i32_1 = arith.constant 0 : i32
    return %c0_i32, %c0_i32_0 : i32, i32
  }
  func.func @transform_3(%arg0: i32) -> (i32, i32, i32) {
    %c0_i32 = arith.constant 0 : i32
    %c0_i32_0 = arith.constant 0 : i32
    %c0_i32_1 = arith.constant 0 : i32
    return %arg0, %c0_i32, %c0_i32_0 : i32, i32, i32
  }
  func.func @transform_4(%arg0: i32) -> (i32, i32) {
    %c0_i32 = arith.constant 0 : i32
    %c0_i32_0 = arith.constant 0 : i32
    %c0_i32_1 = arith.constant 0 : i32
    return %c0_i32, %c0_i32_0 : i32, i32
  }
  func.func @transform_5(%arg0: i32) -> (i32, i32, i32) {
    %c0_i32 = arith.constant 0 : i32
    %c0_i32_0 = arith.constant 0 : i32
    %c0_i32_1 = arith.constant 0 : i32
    return %arg0, %c0_i32, %c0_i32_0 : i32, i32, i32
  }
  func.func @transform_6(%arg0: i32) -> (i32, i32, i32) {
    %c0_i32 = arith.constant 0 : i32
    %c0_i32_0 = arith.constant 0 : i32
    %c0_i32_1 = arith.constant 0 : i32
    return %arg0, %c0_i32, %c0_i32_0 : i32, i32, i32
  }
  func.func @transform_7(%arg0: i32) -> (i32, i32, i32) {
    %c0_i32 = arith.constant 0 : i32
    %c0_i32_0 = arith.constant 0 : i32
    %c0_i32_1 = arith.constant 0 : i32
    return %arg0, %c0_i32, %c0_i32_0 : i32, i32, i32
  }
}

</mosaic_0001>

<llo_original>
// kernel: model_forward.2
$region0: #{model_forward.2}
  #allocation0 [shape = 'u32[]', space=smem, size = 0x4, offset = 0x4, fixed_abs, tag = 'smem constant byte address 0x4 - core index']
  #allocation1 [shape = 'u32[144,128]{1,0:T(1,128)}', space=vmem, size = 0x12000, scoped, tag = 'internal scratch']
  %s0 = inlined_call_operand.vmem [shape: f32[2,256,4], index: 0, kind: input, shape index: {}]
  %s1 = inlined_call_operand.hbm [shape: f32[4,32], index: 1, kind: input, shape index: {}]
  %s2 = inlined_call_operand.hbm [shape: f32[1,32], index: 2, kind: input, shape index: {}]
  %s3 = inlined_call_operand.hbm [shape: f32[32,256], index: 3, kind: input, shape index: {}]
  %s4 = inlined_call_operand.hbm [shape: f32[1,256], index: 4, kind: input, shape index: {}]
  %s5 = inlined_call_operand.vmem [shape: f32[2,1,256], index: 5, kind: output, shape index: {}]
  %s6 = sld [smem:[#allocation0]]
  $region69: #{model_forward.2} parent=0
    _
  %s8 = ssub.s32 1, %s6
  %s9 = scalar_select 0, %s8, %s6
  $region1: #{model_forward.2} parent=0
    #allocation2 [shape = 'u8[2048]{0}', space=vmem, size = 0x800, scoped, tag = 'input window, operand 1, single buffered']
    #allocation3 [shape = 's32[2]{0}', space=sflag, size = 0x8, scoped, tag = 'scoped memory for model_forward.2']
    #allocation4 [shape = 'u8[512]{0}', space=vmem, size = 0x400, scoped, tag = 'input window, operand 2, single buffered']
    #allocation5 [shape = 's32[1]{0}', space=sflag, size = 0x4, scoped, tag = 'scoped memory for model_forward.2']
    #allocation6 [shape = 'u8[32768]{0}', space=vmem, size = 0x8000, scoped, tag = 'input window, operand 3, single buffered']
    #allocation7 [shape = 'u8[1024]{0}', space=vmem, size = 0x400, scoped, tag = 'input window, operand 4, single buffered']
    #allocation8 [shape = 's32[1]{0}', space=sflag, size = 0x4, scoped, tag = 'scoped memory for model_forward.2']
    %10 = vsyncpa [#allocation3], 0
    %11 = vsyncpa [#allocation5], 0
    %12 = vsyncpa [#allocation8], 0
    loop: start=0, step=1, limit=4
    $region2: #{model_forward.2} parent=1 // loop_pre_header
      _
    $region3: #{model_forward.2} parent=1 // loop_header
      %s14 = sphi 0, %s18
      %p15 = scmp.ge.s32.totalorder %s14, 4
      %s24 = sphi 0, %s26
      %s27 = sphi 0, %s24
      %s28 = sphi 0, %s27
      %s44 = sphi 0, %s28
      %s48 = sphi 0, %s48
      %s50 = sphi 0, %s48
      %s51 = sphi 0, %s50
      %s65 = sphi 0, %s51
      %s69 = sphi 0, %s69
      %s71 = sphi 0, %s69
      %s72 = sphi 0, %s71
      %s86 = sphi 0, %s72
      %s90 = sphi 0, %s90
      %s92 = sphi 0, %s90
      %s93 = sphi 0, %s92
      %s107 = sphi 0, %s93
      %s111 = sphi 0, %s111
      %s113 = sphi 0, %s111
      %s114 = sphi 0, %s113
      %s128 = sphi 0, %s114
      %s134 = sphi 0, %s136
      %s137 = sphi 0, %s134
      %s138 = sphi 0, %s137
      %s154 = sphi 0, %s138
    $region4: #{model_forward.2} parent=1 // loop_header_branch
      %17 = sbr.rel (%p15) target = $region8
    $region5: #{model_forward.2} parent=1 // loop_body
      %s19 = ssub.s32 %s14, 1
      %s20 = ssub.s32 %s14, 2
      %s21 = sadd.s32 %s14, 1
      %s22 = ssub.s32 %s14, %s21
      %p23 = scmp.eq.s32.totalorder %s22, 0
      %s25 = sadd.s32 %s24, 1
      %s26 = scalar_select %p23, %s24, %s25
      %p29 = pneg %p23
      %p30 = scmp.eq.s32.totalorder %s14, 1
      %p31 = por %p29, %p30
      %p32 = scmp.ne.s32.totalorder %s24, %s27
      %p33 = scmp.eq.s32.totalorder %s14, 0
      %p34 = por %p32, %p33
      %p35 = scmp.ne.s32.totalorder %s24, %s27
      %p36 = scmp.eq.s32.totalorder %s19, 1
      %p37 = por %p35, %p36
      %p38 = scmp.ne.s32.totalorder %s27, %s28
      %p39 = scmp.eq.s32.totalorder %s19, 0
      %p40 = por %p38, %p39
      %p41 = scmp.ne.s32.totalorder %s27, %s28
      %p42 = scmp.eq.s32.totalorder %s20, 1
      %p43 = por %p41, %p42
      %p45 = scmp.ne.s32.totalorder %s28, %s44
      %p46 = scmp.eq.s32.totalorder %s20, 0
      %p47 = por %p45, %p46
      %s49 = sadd.s32 %s48, 1
      %p52 = scmp.eq.s32.totalorder %s14, 1
      %p53 = scmp.ne.s32.totalorder %s48, %s50
      %p54 = scmp.eq.s32.totalorder %s14, 0
      %p55 = por %p53, %p54
      %p56 = scmp.ne.s32.totalorder %s48, %s50
      %p57 = scmp.eq.s32.totalorder %s19, 1
      %p58 = por %p56, %p57
      %p59 = scmp.ne.s32.totalorder %s50, %s51
      %p60 = scmp.eq.s32.totalorder %s19, 0
      %p61 = por %p59, %p60
      %p62 = scmp.ne.s32.totalorder %s50, %s51
      %p63 = scmp.eq.s32.totalorder %s20, 1
      %p64 = por %p62, %p63
      %p66 = scmp.ne.s32.totalorder %s51, %s65
      %p67 = scmp.eq.s32.totalorder %s20, 0
      %p68 = por %p66, %p67
      %s70 = sadd.s32 %s69, 1
      %p73 = scmp.eq.s32.totalorder %s14, 1
      %p74 = scmp.ne.s32.totalorder %s69, %s71
      %p75 = scmp.eq.s32.totalorder %s14, 0
      %p76 = por %p74, %p75
      %p77 = scmp.ne.s32.totalorder %s69, %s71
      %p78 = scmp.eq.s32.totalorder %s19, 1
      %p79 = por %p77, %p78
      %p80 = scmp.ne.s32.totalorder %s71, %s72
      %p81 = scmp.eq.s32.totalorder %s19, 0
      %p82 = por %p80, %p81
      %p83 = scmp.ne.s32.totalorder %s71, %s72
      %p84 = scmp.eq.s32.totalorder %s20, 1
      %p85 = por %p83, %p84
      %p87 = scmp.ne.s32.totalorder %s72, %s86
      %p88 = scmp.eq.s32.totalorder %s20, 0
      %p89 = por %p87, %p88
      %s91 = sadd.s32 %s90, 1
      %p94 = scmp.eq.s32.totalorder %s14, 1
      %p95 = scmp.ne.s32.totalorder %s90, %s92
      %p96 = scmp.eq.s32.totalorder %s14, 0
      %p97 = por %p95, %p96
      %p98 = scmp.ne.s32.totalorder %s90, %s92
      %p99 = scmp.eq.s32.totalorder %s19, 1
      %p100 = por %p98, %p99
      %p101 = scmp.ne.s32.totalorder %s92, %s93
      %p102 = scmp.eq.s32.totalorder %s19, 0
      %p103 = por %p101, %p102
      %p104 = scmp.ne.s32.totalorder %s92, %s93
      %p105 = scmp.eq.s32.totalorder %s20, 1
      %p106 = por %p104, %p105
      %p108 = scmp.ne.s32.totalorder %s93, %s107
      %p109 = scmp.eq.s32.totalorder %s20, 0
      %p110 = por %p108, %p109
      %s112 = sadd.s32 %s111, 1
      %p115 = scmp.eq.s32.totalorder %s14, 1
      %p116 = scmp.ne.s32.totalorder %s111, %s113
      %p117 = scmp.eq.s32.totalorder %s14, 0
      %p118 = por %p116, %p117
      %p119 = scmp.ne.s32.totalorder %s111, %s113
      %p120 = scmp.eq.s32.totalorder %s19, 1
      %p121 = por %p119, %p120
      %p122 = scmp.ne.s32.totalorder %s113, %s114
      %p123 = scmp.eq.s32.totalorder %s19, 0
      %p124 = por %p122, %p123
      %p125 = scmp.ne.s32.totalorder %s113, %s114
      %p126 = scmp.eq.s32.totalorder %s20, 1
      %p127 = por %p125, %p126
      %p129 = scmp.ne.s32.totalorder %s114, %s128
      %p130 = scmp.eq.s32.totalorder %s20, 0
      %p131 = por %p129, %p130
      %s132 = ssub.s32 %s14, %s21
      %p133 = scmp.eq.s32.totalorder %s132, 0
      %s135 = sadd.s32 %s134, 1
      %s136 = scalar_select %p133, %s134, %s135
      %p139 = pneg %p133
      %p140 = scmp.eq.s32.totalorder %s14, 1
      %p141 = por %p139, %p140
      %p142 = scmp.ne.s32.totalorder %s134, %s137
      %p143 = scmp.eq.s32.totalorder %s14, 0
      %p144 = por %p142, %p143
      %p145 = scmp.ne.s32.totalorder %s134, %s137
      %p146 = scmp.eq.s32.totalorder %s19, 1
      %p147 = por %p145, %p146
      %p148 = scmp.ne.s32.totalorder %s137, %s138
      %p149 = scmp.eq.s32.totalorder %s19, 0
      %p150 = por %p148, %p149
      %p151 = scmp.ne.s32.totalorder %s137, %s138
      %p152 = scmp.eq.s32.totalorder %s20, 1
      %p153 = por %p151, %p152
      %p155 = scmp.ne.s32.totalorder %s138, %s154
      %p156 = scmp.eq.s32.totalorder %s20, 0
      %p157 = por %p155, %p156
      %p158 = scmp.le.s32.totalorder 1, %s14
      %p159 = scmp.lt.s32.totalorder %s14, 3
      %p160 = pnand %p158, %p159
      %p161 = pneg %p160
      // Predicated region
      $region9: #{model_forward.2} parent=5 // pred_check
        _
      $region10: #{model_forward.2} parent=5 // pred_check_branch
        %163 = sbr.rel (%p160) target = $region12
      $region11: #{model_forward.2} parent=5 // pred_region
        %s164 = ssub.s32 %s14, 1
        // Predicated region
        $region13: #{model_forward.2} parent=11 // pred_check
          %p165 = pneg %p61
        $region14: #{model_forward.2} parent=11 // pred_check_branch
          %167 = sbr.rel (%p165) target = $region16
        $region15: #{model_forward.2} parent=11 // pred_region
          %s169 = ssub.s32 64, 64
          %170 = vsyncadd [#allocation3], %s169
          %s172 = sshll.u32 [#allocation2], 4
          %s173 = int_to_ptr.vmem [resolvable:$true] %s172
          %175 = dma.hbm_to_vmem [thread:$0]  %s1, 64, %s173, [#allocation3]
        $region16: #{model_forward.2} parent=11 // pred_fallthru
          _
        // Predicated region
        $region17: #{model_forward.2} parent=11 // pred_check
          %p176 = pneg %p82
        $region18: #{model_forward.2} parent=11 // pred_check_branch
          %178 = sbr.rel (%p176) target = $region20
        $region19: #{model_forward.2} parent=11 // pred_region
          %s180 = ssub.s32 16, 16
          %181 = vsyncadd [#allocation5], %s180
          %s183 = sshll.u32 [#allocation4], 4
          %s184 = int_to_ptr.vmem [resolvable:$true] %s183
          %186 = dma.hbm_to_vmem [thread:$0]  %s2, 16, %s184, [#allocation5]
        $region20: #{model_forward.2} parent=11 // pred_fallthru
          _
        // Predicated region
        $region21: #{model_forward.2} parent=11 // pred_check
          %p187 = pneg %p103
        $region22: #{model_forward.2} parent=11 // pred_check_branch
          %189 = sbr.rel (%p187) target = $region24
        $region23: #{model_forward.2} parent=11 // pred_region
          %s191 = ssub.s32 1024, 1024
          %192 = vsyncadd [#allocation5], %s191
          %s193 = sshll.u32 [#allocation6], 4
          %s194 = int_to_ptr.vmem [resolvable:$true] %s193
          %199 = dma.hbm_to_vmem [thread:$0]  %s3, 1024, %s194, [#allocation5], 256, 256, 16
        $region24: #{model_forward.2} parent=11 // pred_fallthru
          _
        // Predicated region
        $region25: #{model_forward.2} parent=11 // pred_check
          %p200 = pneg %p124
        $region26: #{model_forward.2} parent=11 // pred_check_branch
          %202 = sbr.rel (%p200) target = $region28
        $region27: #{model_forward.2} parent=11 // pred_region
          %s204 = ssub.s32 32, 32
          %205 = vsyncadd [#allocation8], %s204
          %s207 = sshll.u32 [#allocation7], 4
          %s208 = int_to_ptr.vmem [resolvable:$true] %s207
          %210 = dma.hbm_to_vmem [thread:$0]  %s4, 32, %s208, [#allocation8]
        $region28: #{model_forward.2} parent=11 // pred_fallthru
          _
      $region12: #{model_forward.2} parent=5 // pred_fallthru
        _
      %p211 = scmp.lt.s32.totalorder %s14, 2
      // Predicated region
      $region29: #{model_forward.2} parent=5 // pred_check
        %p212 = pneg %p211
      $region30: #{model_forward.2} parent=5 // pred_check_branch
        %214 = sbr.rel (%p212) target = $region32
      $region31: #{model_forward.2} parent=5 // pred_region
        // Predicated region
        $region33: #{model_forward.2} parent=31 // pred_check
          %p215 = pneg %p34
        $region34: #{model_forward.2} parent=31 // pred_check_branch
          %217 = sbr.rel (%p215) target = $region36
        $region35: #{model_forward.2} parent=31 // pred_region
          %p218 = scmp.lt.s32.totalorder %s14, 1
          %s219 = scalar_select %p218, %s14, 1
          %s220 = smul.addr %s219, 32
          %s221 = smul.addr %s220, 8
          %s222 = scalar_lea.vmem %s0, %s221
        $region36: #{model_forward.2} parent=31 // pred_fallthru
          _
      $region32: #{model_forward.2} parent=5 // pred_fallthru
        _
      %p223 = scmp.le.s32.totalorder 1, %s14
      %p224 = scmp.lt.s32.totalorder %s14, 3
      %p225 = pnand %p223, %p224
      %p226 = pneg %p225
      // Predicated region
      $region37: #{model_forward.2} parent=5 // pred_check
        _
      $region38: #{model_forward.2} parent=5 // pred_check_branch
        %228 = sbr.rel (%p225) target = $region40
      $region39: #{model_forward.2} parent=5 // pred_region
        %s229 = ssub.s32 %s14, 1
        // Predicated region
        $region41: #{model_forward.2} parent=39 // pred_check
          %p230 = pneg %p61
        $region42: #{model_forward.2} parent=39 // pred_check_branch
          %232 = sbr.rel (%p230) target = $region44
        $region43: #{model_forward.2} parent=39 // pred_region
          %233 = dma.done [#allocation3], 64
        $region44: #{model_forward.2} parent=39 // pred_fallthru
          _
        // Predicated region
        $region45: #{model_forward.2} parent=39 // pred_check
          %p234 = pneg %p82
        $region46: #{model_forward.2} parent=39 // pred_check_branch
          %236 = sbr.rel (%p234) target = $region48
        $region47: #{model_forward.2} parent=39 // pred_region
          %237 = dma.done [#allocation5], 16
        $region48: #{model_forward.2} parent=39 // pred_fallthru
          _
        // Predicated region
        $region49: #{model_forward.2} parent=39 // pred_check
          %p238 = pneg %p103
        $region50: #{model_forward.2} parent=39 // pred_check_branch
          %240 = sbr.rel (%p238) target = $region52
        $region51: #{model_forward.2} parent=39 // pred_region
          %241 = dma.done [#allocation5], 1024
        $region52: #{model_forward.2} parent=39 // pred_fallthru
          _
        // Predicated region
        $region53: #{model_forward.2} parent=39 // pred_check
          %p242 = pneg %p124
        $region54: #{model_forward.2} parent=39 // pred_check_branch
          %244 = sbr.rel (%p242) target = $region56
        $region55: #{model_forward.2} parent=39 // pred_region
          %245 = dma.done [#allocation8], 32
        $region56: #{model_forward.2} parent=39 // pred_fallthru
          _
        %p246 = scmp.lt.s32.totalorder %s19, 1
        %s247 = scalar_select %p246, %s19, 1
        %s248 = smul.addr %s247, 32
        %s249 = smul.addr %s248, 8
        %s250 = scalar_lea.vmem %s0, %s249
        %p251 = pneg %p40
        %p252 = pneg %p37
        %p253 = pneg %p61
        %p254 = pneg %p58
        %p255 = pneg %p82
        %p256 = pneg %p79
        %p257 = pneg %p103
        %p258 = pneg %p100
        %p259 = pneg %p124
        %p260 = pneg %p121
        %p261 = pneg %p150
        %p262 = pneg %p147
        %p263 = scmp.lt.s32.totalorder %s19, 1
        %s264 = scalar_select %p263, %s19, 1
        %s265 = smul.addr %s264, 2
        %s266 = scalar_lea.vmem %s5, %s265
        %p267 = scmp.lt.s32.totalorder %s19, 1
        %s268 = scalar_select %p267, %s19, 1
        %s269 = smul.addr %s268, 32
        %s270 = smul.addr %s269, 8
        %s271 = scalar_lea.vmem %s0, %s270
        %p272 = scmp.lt.s32.totalorder %s19, 1
        %s273 = scalar_select %p272, %s19, 1
        %s274 = smul.addr %s273, 2
        %s275 = scalar_lea.vmem %s5, %s274
        %v276 = vld [vmem:[%s271] sm:$0xff]
        %v277 = vld [vmem:[%s271 + $0x8] sm:$0xff]
        %v278 = vld [vmem:[%s271 + $0x10] sm:$0xff]
        %v279 = vld [vmem:[%s271 + $0x18] sm:$0xff]
        %v280 = vld [vmem:[%s271 + $0x20] sm:$0xff]
        %v281 = vld [vmem:[%s271 + $0x28] sm:$0xff]
        %v282 = vld [vmem:[%s271 + $0x30] sm:$0xff]
        %v283 = vld [vmem:[%s271 + $0x38] sm:$0xff]
        %v284 = vld [vmem:[%s271 + $0x40] sm:$0xff]
        %v285 = vld [vmem:[%s271 + $0x48] sm:$0xff]
        %v286 = vld [vmem:[%s271 + $0x50] sm:$0xff]
        %v287 = vld [vmem:[%s271 + $0x58] sm:$0xff]
        %v288 = vld [vmem:[%s271 + $0x60] sm:$0xff]
        %v289 = vld [vmem:[%s271 + $0x68] sm:$0xff]
        %v290 = vld [vmem:[%s271 + $0x70] sm:$0xff]
        %v291 = vld [vmem:[%s271 + $0x78] sm:$0xff]
        %v292 = vld [vmem:[%s271 + $0x80] sm:$0xff]
        %v293 = vld [vmem:[%s271 + $0x88] sm:$0xff]
        %v294 = vld [vmem:[%s271 + $0x90] sm:$0xff]
        %v295 = vld [vmem:[%s271 + $0x98] sm:$0xff]
        %v296 = vld [vmem:[%s271 + $0xa0] sm:$0xff]
        %v297 = vld [vmem:[%s271 + $0xa8] sm:$0xff]
        %v298 = vld [vmem:[%s271 + $0xb0] sm:$0xff]
        %v299 = vld [vmem:[%s271 + $0xb8] sm:$0xff]
        %v300 = vld [vmem:[%s271 + $0xc0] sm:$0xff]
        %v301 = vld [vmem:[%s271 + $0xc8] sm:$0xff]
        %v302 = vld [vmem:[%s271 + $0xd0] sm:$0xff]
        %v303 = vld [vmem:[%s271 + $0xd8] sm:$0xff]
        %v304 = vld [vmem:[%s271 + $0xe0] sm:$0xff]
        %v305 = vld [vmem:[%s271 + $0xe8] sm:$0xff]
        %v306 = vld [vmem:[%s271 + $0xf0] sm:$0xff]
        %v307 = vld [vmem:[%s271 + $0xf8] sm:$0xff]
        %v308 = vld [vmem:[#allocation2] sm:$0xf]
        %v309 = vld [vmem:[#allocation4] sm:$0x1]
        %v311 = vlaneseq
        %v312 = vshrl.u32 %v311, 7
        %v313 = vsub.s32 0, %v312
        %v314 = vrot.slane %v309, %v313
        %vm316 = vcmask 31744
        %v318 = vsel %vm316, %v276, 0
        %v321 = vsel %vm316, %v277, 0
        %v324 = vsel %vm316, %v278, 0
        %v327 = vsel %vm316, %v279, 0
        %v330 = vsel %vm316, %v280, 0
        %v333 = vsel %vm316, %v281, 0
        %v336 = vsel %vm316, %v282, 0
        %v339 = vsel %vm316, %v283, 0
        %v342 = vsel %vm316, %v284, 0
        %v345 = vsel %vm316, %v285, 0
        %v348 = vsel %vm316, %v286, 0
        %v351 = vsel %vm316, %v287, 0
        %v354 = vsel %vm316, %v288, 0
        %v357 = vsel %vm316, %v289, 0
        %v360 = vsel %vm316, %v290, 0
        %v363 = vsel %vm316, %v291, 0
        %v366 = vsel %vm316, %v292, 0
        %v369 = vsel %vm316, %v293, 0
        %v372 = vsel %vm316, %v294, 0
        %v375 = vsel %vm316, %v295, 0
        %v378 = vsel %vm316, %v296, 0
        %v381 = vsel %vm316, %v297, 0
        %v384 = vsel %vm316, %v298, 0
        %v387 = vsel %vm316, %v299, 0
        %v390 = vsel %vm316, %v300, 0
        %v393 = vsel %vm316, %v301, 0
        %v396 = vsel %vm316, %v302, 0
        %v399 = vsel %vm316, %v303, 0
        %v402 = vsel %vm316, %v304, 0
        %v405 = vsel %vm316, %v305, 0
        %v408 = vsel %vm316, %v306, 0
        %v411 = vsel %vm316, %v307, 0
        %vm413 = vcmask 1043456
        %v415 = vsel %vm413, %v308, 0
        %417 = vmatprep.subr.mxu0 0.0
        %418 = vmatpush1.msra.mxu0 %v415
        %419 = vmatprep.subr.mxu0 0.0
        %420 = vmatpush1.msra.mxu0 0.0
        %421 = vmatprep.subr.mxu0 0.0
        %422 = vmatpush1.msra.mxu0 0.0
        %423 = vmatprep.subr.mxu0 0.0
        %424 = vmatpush1.msra.mxu0 0.0
        %425 = vmatprep.subr.mxu0 0.0
        %426 = vmatpush1.msra.mxu0 0.0
        %427 = vmatprep.subr.mxu0 0.0
        %428 = vmatpush1.msra.mxu0 0.0
        %429 = vmatprep.subr.mxu0 0.0
        %430 = vmatpush1.msra.mxu0 0.0
        %431 = vmatprep.subr.mxu0 0.0
        %432 = vmatpush1.msra.mxu0 0.0
        %433 = vmatprep.subr.mxu0 0.0
        %434 = vmatpush1.msra.mxu0 0.0
        %435 = vmatprep.subr.mxu0 0.0
        %436 = vmatpush1.msra.mxu0 0.0
        %437 = vmatprep.subr.mxu0 0.0
        %438 = vmatpush1.msra.mxu0 0.0
        %439 = vmatprep.subr.mxu0 0.0
        %440 = vmatpush1.msra.mxu0 0.0
        %441 = vmatprep.subr.mxu0 0.0
        %442 = vmatpush1.msra.mxu0 0.0
        %443 = vmatprep.subr.mxu0 0.0
        %444 = vmatpush1.msra.mxu0 0.0
        %445 = vmatprep.subr.mxu0 0.0
        %446 = vmatpush1.msra.mxu0 0.0
        %447 = vmatprep.subr.mxu0 0.0
        %448 = vmatpush1.msra.mxu0 0.0
        %449 = vmatprep.subr.mxu0 0.0
        %450 = vmatpush1.msra.mxu0 0.0
        %451 = vmatprep.subr.mxu0 0.0
        %452 = vmatpush1.msra.mxu0 0.0
        %453 = vmatprep.subr.mxu0 0.0
        %454 = vmatpush1.msra.mxu0 0.0
        %455 = vmatprep.subr.mxu0 0.0
        %456 = vmatpush1.msra.mxu0 0.0
        %457 = vmatprep.subr.mxu0 0.0
        %458 = vmatpush1.msra.mxu0 0.0
        %459 = vmatprep.subr.mxu0 0.0
        %460 = vmatpush1.msra.mxu0 0.0
        %461 = vmatprep.subr.mxu0 0.0
        %462 = vmatpush1.msra.mxu0 0.0
        %463 = vmatprep.subr.mxu0 0.0
        %464 = vmatpush1.msra.mxu0 0.0
        %465 = vmatprep.subr.mxu0 0.0
        %466 = vmatpush1.msra.mxu0 0.0
        %467 = vmatprep.subr.mxu0 0.0
        %468 = vmatpush1.msra.mxu0 0.0
        %469 = vmatprep.subr.mxu0 0.0
        %470 = vmatpush1.msra.mxu0 0.0
        %471 = vmatprep.subr.mxu0 0.0
        %472 = vmatpush1.msra.mxu0 0.0
        %473 = vmatprep.subr.mxu0 0.0
        %474 = vmatpush1.msra.mxu0 0.0
        %475 = vmatprep.subr.mxu0 0.0
        %476 = vmatpush1.msra.mxu0 0.0
        %477 = vmatprep.subr.mxu0 0.0
        %478 = vmatpush1.msra.mxu0 0.0
        %479 = vmatprep.subr.mxu0 0.0
        %480 = vmatpush1.msra.mxu0 0.0
        %481 = vmatprep.mubr.f32.mxu0 0.0
        %482 = vmatmul.mubr.f32.gmra.mrb[0].mxu0 %v318
        %v483 = vpop.f32.mrb[0].mxu0
        %v484 = vadd.f32 %v314, %v483
        %v485 = vpop.f32.mrb[0].mxu0
        %486 = vmatprep.mubr.f32.mxu0 0.0
        %487 = vmatmul.mubr.f32.gmra.mrb[0].mxu0 %v321
        %v488 = vpop.f32.mrb[0].mxu0
        %v489 = vadd.f32 %v314, %v488
        %v490 = vpop.f32.mrb[0].mxu0
        %491 = vmatprep.mubr.f32.mxu0 0.0
        %492 = vmatmul.mubr.f32.gmra.mrb[0].mxu0 %v324
        %v493 = vpop.f32.mrb[0].mxu0
        %v494 = vadd.f32 %v314, %v493
        %v495 = vpop.f32.mrb[0].mxu0
        %496 = vmatprep.mubr.f32.mxu0 0.0
        %497 = vmatmul.mubr.f32.gmra.mrb[0].mxu0 %v327
        %v498 = vpop.f32.mrb[0].mxu0
        %v499 = vadd.f32 %v314, %v498
        %v500 = vpop.f32.mrb[0].mxu0
        %501 = vmatprep.mubr.f32.mxu0 0.0
        %502 = vmatmul.mubr.f32.gmra.mrb[0].mxu0 %v330
        %v503 = vpop.f32.mrb[0].mxu0
        %v504 = vadd.f32 %v314, %v503
        %v505 = vpop.f32.mrb[0].mxu0
        %506 = vmatprep.mubr.f32.mxu0 0.0
        %507 = vmatmul.mubr.f32.gmra.mrb[0].mxu0 %v333
        %v508 = vpop.f32.mrb[0].mxu0
        %v509 = vadd.f32 %v314, %v508
        %v510 = vpop.f32.mrb[0].mxu0
        %511 = vmatprep.mubr.f32.mxu0 0.0
        %512 = vmatmul.mubr.f32.gmra.mrb[0].mxu0 %v336
        %v513 = vpop.f32.mrb[0].mxu0
        %v514 = vadd.f32 %v314, %v513
        %v515 = vpop.f32.mrb[0].mxu0
        %516 = vmatprep.mubr.f32.mxu0 0.0
        %517 = vmatmul.mubr.f32.gmra.mrb[0].mxu0 %v339
        %v518 = vpop.f32.mrb[0].mxu0
        %v519 = vadd.f32 %v314, %v518
        %v520 = vpop.f32.mrb[0].mxu0
        %521 = vmatprep.mubr.f32.mxu0 0.0
        %522 = vmatmul.mubr.f32.gmra.mrb[0].mxu0 %v342
        %v523 = vpop.f32.mrb[0].mxu0
        %v524 = vadd.f32 %v314, %v523
        %v525 = vpop.f32.mrb[0].mxu0
        %526 = vmatprep.mubr.f32.mxu0 0.0
        %527 = vmatmul.mubr.f32.gmra.mrb[0].mxu0 %v345
        %v528 = vpop.f32.mrb[0].mxu0
        %v529 = vadd.f32 %v314, %v528
        %v530 = vpop.f32.mrb[0].mxu0
        %531 = vmatprep.mubr.f32.mxu0 0.0
        %532 = vmatmul.mubr.f32.gmra.mrb[0].mxu0 %v348
        %v533 = vpop.f32.mrb[0].mxu0
        %v534 = vadd.f32 %v314, %v533
        %v535 = vpop.f32.mrb[0].mxu0
        %536 = vmatprep.mubr.f32.mxu0 0.0
        %537 = vmatmul.mubr.f32.gmra.mrb[0].mxu0 %v351
        %v538 = vpop.f32.mrb[0].mxu0
        %v539 = vadd.f32 %v314, %v538
        %v540 = vpop.f32.mrb[0].mxu0
        %541 = vmatprep.mubr.f32.mxu0 0.0
        %542 = vmatmul.mubr.f32.gmra.mrb[0].mxu0 %v354
        %v543 = vpop.f32.mrb[0].mxu0
        %v544 = vadd.f32 %v314, %v543
        %v545 = vpop.f32.mrb[0].mxu0
        %546 = vmatprep.mubr.f32.mxu0 0.0
        %547 = vmatmul.mubr.f32.gmra.mrb[0].mxu0 %v357
        %v548 = vpop.f32.mrb[0].mxu0
        %v549 = vadd.f32 %v314, %v548
        %v550 = vpop.f32.mrb[0].mxu0
        %551 = vmatprep.mubr.f32.mxu0 0.0
        %552 = vmatmul.mubr.f32.gmra.mrb[0].mxu0 %v360
        %v553 = vpop.f32.mrb[0].mxu0
        %v554 = vadd.f32 %v314, %v553
        %v555 = vpop.f32.mrb[0].mxu0
        %556 = vmatprep.mubr.f32.mxu0 0.0
        %557 = vmatmul.mubr.f32.gmra.mrb[0].mxu0 %v363
        %v558 = vpop.f32.mrb[0].mxu0
        %v559 = vadd.f32 %v314, %v558
        %v560 = vpop.f32.mrb[0].mxu0
        %561 = vmatprep.mubr.f32.mxu0 0.0
        %562 = vmatmul.mubr.f32.gmra.mrb[0].mxu0 %v366
        %v563 = vpop.f32.mrb[0].mxu0
        %v564 = vadd.f32 %v314, %v563
        %v565 = vpop.f32.mrb[0].mxu0
        %566 = vmatprep.mubr.f32.mxu0 0.0
        %567 = vmatmul.mubr.f32.gmra.mrb[0].mxu0 %v369
        %v568 = vpop.f32.mrb[0].mxu0
        %v569 = vadd.f32 %v314, %v568
        %v570 = vpop.f32.mrb[0].mxu0
        %571 = vmatprep.mubr.f32.mxu0 0.0
        %572 = vmatmul.mubr.f32.gmra.mrb[0].mxu0 %v372
        %v573 = vpop.f32.mrb[0].mxu0
        %v574 = vadd.f32 %v314, %v573
        %v575 = vpop.f32.mrb[0].mxu0
        %576 = vmatprep.mubr.f32.mxu0 0.0
        %577 = vmatmul.mubr.f32.gmra.mrb[0].mxu0 %v375
        %v578 = vpop.f32.mrb[0].mxu0
        %v579 = vadd.f32 %v314, %v578
        %v580 = vpop.f32.mrb[0].mxu0
        %581 = vmatprep.mubr.f32.mxu0 0.0
        %582 = vmatmul.mubr.f32.gmra.mrb[0].mxu0 %v378
        %v583 = vpop.f32.mrb[0].mxu0
        %v584 = vadd.f32 %v314, %v583
        %v585 = vpop.f32.mrb[0].mxu0
        %586 = vmatprep.mubr.f32.mxu0 0.0
        %587 = vmatmul.mubr.f32.gmra.mrb[0].mxu0 %v381
        %v588 = vpop.f32.mrb[0].mxu0
        %v589 = vadd.f32 %v314, %v588
        %v590 = vpop.f32.mrb[0].mxu0
        %591 = vmatprep.mubr.f32.mxu0 0.0
        %592 = vmatmul.mubr.f32.gmra.mrb[0].mxu0 %v384
        %v593 = vpop.f32.mrb[0].mxu0
        %v594 = vadd.f32 %v314, %v593
        %v595 = vpop.f32.mrb[0].mxu0
        %596 = vmatprep.mubr.f32.mxu0 0.0
        %597 = vmatmul.mubr.f32.gmra.mrb[0].mxu0 %v387
        %v598 = vpop.f32.mrb[0].mxu0
        %v599 = vadd.f32 %v314, %v598
        %v600 = vpop.f32.mrb[0].mxu0
        %601 = vmatprep.mubr.f32.mxu0 0.0
        %602 = vmatmul.mubr.f32.gmra.mrb[0].mxu0 %v390
        %v603 = vpop.f32.mrb[0].mxu0
        %v604 = vadd.f32 %v314, %v603
        %v605 = vpop.f32.mrb[0].mxu0
        %606 = vmatprep.mubr.f32.mxu0 0.0
        %607 = vmatmul.mubr.f32.gmra.mrb[0].mxu0 %v393
        %v608 = vpop.f32.mrb[0].mxu0
        %v609 = vadd.f32 %v314, %v608
        %v610 = vpop.f32.mrb[0].mxu0
        %611 = vmatprep.mubr.f32.mxu0 0.0
        %612 = vmatmul.mubr.f32.gmra.mrb[0].mxu0 %v396
        %v613 = vpop.f32.mrb[0].mxu0
        %v614 = vadd.f32 %v314, %v613
        %v615 = vpop.f32.mrb[0].mxu0
        %616 = vmatprep.mubr.f32.mxu0 0.0
        %617 = vmatmul.mubr.f32.gmra.mrb[0].mxu0 %v399
        %v618 = vpop.f32.mrb[0].mxu0
        %v619 = vadd.f32 %v314, %v618
        %v620 = vpop.f32.mrb[0].mxu0
        %621 = vmatprep.mubr.f32.mxu0 0.0
        %622 = vmatmul.mubr.f32.gmra.mrb[0].mxu0 %v402
        %v623 = vpop.f32.mrb[0].mxu0
        %v624 = vadd.f32 %v314, %v623
        %v625 = vpop.f32.mrb[0].mxu0
        %626 = vmatprep.mubr.f32.mxu0 0.0
        %627 = vmatmul.mubr.f32.gmra.mrb[0].mxu0 %v405
        %v628 = vpop.f32.mrb[0].mxu0
        %v629 = vadd.f32 %v314, %v628
        %v630 = vpop.f32.mrb[0].mxu0
        %631 = vmatprep.mubr.f32.mxu0 0.0
        %632 = vmatmul.mubr.f32.gmra.mrb[0].mxu0 %v408
        %v633 = vpop.f32.mrb[0].mxu0
        %v634 = vadd.f32 %v314, %v633
        %v635 = vpop.f32.mrb[0].mxu0
        %636 = vmatprep.mubr.f32.mxu0 0.0
        %637 = vmatmul.mubr.f32.gmra.mrb[0].mxu0 %v411
        %v638 = vpop.f32.mrb[0].mxu0
        %v639 = vadd.f32 %v314, %v638
        %v640 = vpop.f32.mrb[0].mxu0
        %641 = vdwg.mxu0
        %v642 = vmax.f32 %v484, 0.0
        %v643 = vmax.f32 %v489, 0.0
        %v644 = vmax.f32 %v494, 0.0
        %v645 = vmax.f32 %v499, 0.0
        %v646 = vmax.f32 %v504, 0.0
        %v647 = vmax.f32 %v509, 0.0
        %v648 = vmax.f32 %v514, 0.0
        %v649 = vmax.f32 %v519, 0.0
        %v650 = vmax.f32 %v524, 0.0
        %v651 = vmax.f32 %v529, 0.0
        %v652 = vmax.f32 %v534, 0.0
        %v653 = vmax.f32 %v539, 0.0
        %v654 = vmax.f32 %v544, 0.0
        %v655 = vmax.f32 %v549, 0.0
        %v656 = vmax.f32 %v554, 0.0
        %v657 = vmax.f32 %v559, 0.0
        %v658 = vmax.f32 %v564, 0.0
        %v659 = vmax.f32 %v569, 0.0
        %v660 = vmax.f32 %v574, 0.0
        %v661 = vmax.f32 %v579, 0.0
        %v662 = vmax.f32 %v584, 0.0
        %v663 = vmax.f32 %v589, 0.0
        %v664 = vmax.f32 %v594, 0.0
        %v665 = vmax.f32 %v599, 0.0
        %v666 = vmax.f32 %v604, 0.0
        %v667 = vmax.f32 %v609, 0.0
        %v668 = vmax.f32 %v614, 0.0
        %v669 = vmax.f32 %v619, 0.0
        %v670 = vmax.f32 %v624, 0.0
        %v671 = vmax.f32 %v629, 0.0
        %v672 = vmax.f32 %v634, 0.0
        %v673 = vmax.f32 %v639, 0.0
        %vm674 = vcmask 261120
        %v675 = vsel %vm674, %v642, 0.0
        %v676 = vsel %vm674, %v643, 0.0
        %v677 = vadd.f32 %v675, %v676
        %v678 = vsel %vm674, %v644, 0.0
        %v679 = vadd.f32 %v677, %v678
        %v680 = vsel %vm674, %v645, 0.0
        %v681 = vadd.f32 %v679, %v680
        %v682 = vsel %vm674, %v646, 0.0
        %v683 = vadd.f32 %v681, %v682
        %v684 = vsel %vm674, %v647, 0.0
        %v685 = vadd.f32 %v683, %v684
        %v686 = vsel %vm674, %v648, 0.0
        %v687 = vadd.f32 %v685, %v686
        %v688 = vsel %vm674, %v649, 0.0
        %v689 = vadd.f32 %v687, %v688
        %v690 = vsel %vm674, %v650, 0.0
        %v691 = vadd.f32 %v689, %v690
        %v692 = vsel %vm674, %v651, 0.0
        %v693 = vadd.f32 %v691, %v692
        %v694 = vsel %vm674, %v652, 0.0
        %v695 = vadd.f32 %v693, %v694
        %v696 = vsel %vm674, %v653, 0.0
        %v697 = vadd.f32 %v695, %v696
        %v698 = vsel %vm674, %v654, 0.0
        %v699 = vadd.f32 %v697, %v698
        %v700 = vsel %vm674, %v655, 0.0
        %v701 = vadd.f32 %v699, %v700
        %v702 = vsel %vm674, %v656, 0.0
        %v703 = vadd.f32 %v701, %v702
        %v704 = vsel %vm674, %v657, 0.0
        %v705 = vadd.f32 %v703, %v704
        %v706 = vsel %vm674, %v658, 0.0
        %v707 = vadd.f32 %v705, %v706
        %v708 = vsel %vm674, %v659, 0.0
        %v709 = vadd.f32 %v707, %v708
        %v710 = vsel %vm674, %v660, 0.0
        %v711 = vadd.f32 %v709, %v710
        %v712 = vsel %vm674, %v661, 0.0
        %v713 = vadd.f32 %v711, %v712
        %v714 = vsel %vm674, %v662, 0.0
        %v715 = vadd.f32 %v713, %v714
        %v716 = vsel %vm674, %v663, 0.0
        %v717 = vadd.f32 %v715, %v716
        %v718 = vsel %vm674, %v664, 0.0
        %v719 = vadd.f32 %v717, %v718
        %v720 = vsel %vm674, %v665, 0.0
        %v721 = vadd.f32 %v719, %v720
        %v722 = vsel %vm674, %v666, 0.0
        %v723 = vadd.f32 %v721, %v722
        %v724 = vsel %vm674, %v667, 0.0
        %v725 = vadd.f32 %v723, %v724
        %v726 = vsel %vm674, %v668, 0.0
        %v727 = vadd.f32 %v725, %v726
        %v728 = vsel %vm674, %v669, 0.0
        %v729 = vadd.f32 %v727, %v728
        %v730 = vsel %vm674, %v670, 0.0
        %v731 = vadd.f32 %v729, %v730
        %v732 = vsel %vm674, %v671, 0.0
        %v733 = vadd.f32 %v731, %v732
        %v734 = vsel %vm674, %v672, 0.0
        %v735 = vadd.f32 %v733, %v734
        %v736 = vsel %vm674, %v673, 0.0
        %v737 = vadd.f32 %v735, %v736
        %v738 = vrot.slane %v737, 4
        %v739 = vadd.f32 %v737, %v738
        %v740 = vrot.slane %v739, 2
        %v741 = vadd.f32 %v739, %v740
        %v742 = vrot.slane %v741, 1
        %v743 = vadd.f32 %v741, %v742
        %v744 = vrcp.pop 256.0
        %v745 = vmul.f32 %v743, %v744
        %v746 = vld [vmem:[#allocation6] sm:$0xff]
        %v747 = vld [vmem:[#allocation6 + $0x8] sm:$0xff]
        %v748 = vld [vmem:[#allocation6 + $0x10] sm:$0xff]
        %v749 = vld [vmem:[#allocation6 + $0x18] sm:$0xff]
        %v750 = vld [vmem:[#allocation6 + $0x20] sm:$0xff]
        %v751 = vld [vmem:[#allocation6 + $0x28] sm:$0xff]
        %v752 = vld [vmem:[#allocation6 + $0x30] sm:$0xff]
        %v753 = vld [vmem:[#allocation6 + $0x38] sm:$0xff]
        %v754 = vld [vmem:[#allocation7] sm:$0x3]
        %v756 = vlaneseq
        %v757 = vshrl.u32 %v756, 7
        %v758 = vsub.s32 0, %v757
        %v759 = vrot.slane %v754, %v758
        %v760 = vlaneseq
        %v761 = vshrl.u32 %v760, 7
        %v762 = vsub.s32 1, %v761
        %v763 = vrot.slane %v754, %v762
        %v767 = vsel %vm674, %v745, 0
        %769 = vmatprep.subr.mxu0 %v747
        %770 = vmatpush1.msra.mxu0 %v746
        %771 = vmatprep.subr.mxu0 %v749
        %772 = vmatpush1.msra.mxu0 %v748
        %773 = vmatprep.subr.mxu0 %v751
        %774 = vmatpush1.msra.mxu0 %v750
        %775 = vmatprep.subr.mxu0 %v753
        %776 = vmatpush1.msra.mxu0 %v752
        %777 = vmatprep.subr.mxu0 0.0
        %778 = vmatpush1.msra.mxu0 0.0
        %779 = vmatprep.subr.mxu0 0.0
        %780 = vmatpush1.msra.mxu0 0.0
        %781 = vmatprep.subr.mxu0 0.0
        %782 = vmatpush1.msra.mxu0 0.0
        %783 = vmatprep.subr.mxu0 0.0
        %784 = vmatpush1.msra.mxu0 0.0
        %785 = vmatprep.subr.mxu0 0.0
        %786 = vmatpush1.msra.mxu0 0.0
        %787 = vmatprep.subr.mxu0 0.0
        %788 = vmatpush1.msra.mxu0 0.0
        %789 = vmatprep.subr.mxu0 0.0
        %790 = vmatpush1.msra.mxu0 0.0
        %791 = vmatprep.subr.mxu0 0.0
        %792 = vmatpush1.msra.mxu0 0.0
        %793 = vmatprep.subr.mxu0 0.0
        %794 = vmatpush1.msra.mxu0 0.0
        %795 = vmatprep.subr.mxu0 0.0
        %796 = vmatpush1.msra.mxu0 0.0
        %797 = vmatprep.subr.mxu0 0.0
        %798 = vmatpush1.msra.mxu0 0.0
        %799 = vmatprep.subr.mxu0 0.0
        %800 = vmatpush1.msra.mxu0 0.0
        %801 = vmatprep.subr.mxu0 0.0
        %802 = vmatpush1.msra.mxu0 0.0
        %803 = vmatprep.subr.mxu0 0.0
        %804 = vmatpush1.msra.mxu0 0.0
        %805 = vmatprep.subr.mxu0 0.0
        %806 = vmatpush1.msra.mxu0 0.0
        %807 = vmatprep.subr.mxu0 0.0
        %808 = vmatpush1.msra.mxu0 0.0
        %809 = vmatprep.subr.mxu0 0.0
        %810 = vmatpush1.msra.mxu0 0.0
        %811 = vmatprep.subr.mxu0 0.0
        %812 = vmatpush1.msra.mxu0 0.0
        %813 = vmatprep.subr.mxu0 0.0
        %814 = vmatpush1.msra.mxu0 0.0
        %815 = vmatprep.subr.mxu0 0.0
        %816 = vmatpush1.msra.mxu0 0.0
        %817 = vmatprep.subr.mxu0 0.0
        %818 = vmatpush1.msra.mxu0 0.0
        %819 = vmatprep.subr.mxu0 0.0
        %820 = vmatpush1.msra.mxu0 0.0
        %821 = vmatprep.subr.mxu0 0.0
        %822 = vmatpush1.msra.mxu0 0.0
        %823 = vmatprep.subr.mxu0 0.0
        %824 = vmatpush1.msra.mxu0 0.0
        %825 = vmatprep.subr.mxu0 0.0
        %826 = vmatpush1.msra.mxu0 0.0
        %827 = vmatprep.subr.mxu0 0.0
        %828 = vmatpush1.msra.mxu0 0.0
        %829 = vmatprep.subr.mxu0 0.0
        %830 = vmatpush1.msra.mxu0 0.0
        %831 = vmatprep.subr.mxu0 0.0
        %832 = vmatpush1.msra.mxu0 0.0
        %833 = vmatprep.mubr.f32.mxu0 0.0
        %834 = vmatmul.mubr.f32.gmra.mrb[0].mxu0 %v767
        %v835 = vpop.f32.mrb[0].mxu0
        %v836 = vadd.f32 %v759, %v835
        %v837 = vpop.f32.mrb[0].mxu0
        %v838 = vadd.f32 %v763, %v837
        %839 = vdwg.mxu0
        %v842 = vcombine.low %v836, %v838
        %v844 = vunpack.c.l.s4 1966171168
        %v845 = vunpack.c.0.s8 %v844
        %v846 = vlaneseq
        %v847 = vshrl.u32 %v846, 7
        %v848 = vsub.s32 %v845, %v847
        %v849 = vrot.slane %v842, %v848
        %v851 = vunpack.c.l.s4 1966171168
        %v852 = vunpack.c.0.s8 %v851
        %v853 = vlaneseq
        %v854 = vshrl.u32 %v853, 7
        %v855 = vsub.s32 %v852, %v854
        %v856 = vrot.slane %v849, %v855
        %v858 = vlaneseq
        %vm859 = vcmp.ge.s32.totalorder %v858, 0
        %vm860 = vcmp.lt.s32.totalorder %v858, 256
        %vm861 = vmand %vm859, %vm860
        %862 = vst.msk [vmem:[%s275] sm:$0x3] %vm861, %v856
        %p863 = scmp.lt.s32.totalorder %s19, 1
        %s864 = scalar_select %p863, %s19, 1
        %s865 = smul.addr %s864, 2
        %s866 = scalar_lea.vmem %s5, %s865
        // Predicated region
        $region57: #{model_forward.2} parent=39 // pred_check
          %p867 = pneg %p147
        $region58: #{model_forward.2} parent=39 // pred_check_branch
          %869 = sbr.rel (%p867) target = $region60
        $region59: #{model_forward.2} parent=39 // pred_region
          _
        $region60: #{model_forward.2} parent=39 // pred_fallthru
          _
      $region40: #{model_forward.2} parent=5 // pred_fallthru
        _
      %p870 = scmp.le.s32.totalorder 2, %s14
      // Predicated region
      $region61: #{model_forward.2} parent=5 // pred_check
        %p871 = pneg %p870
      $region62: #{model_forward.2} parent=5 // pred_check_branch
        %873 = sbr.rel (%p871) target = $region64
      $region63: #{model_forward.2} parent=5 // pred_region
        %s874 = ssub.s32 %s14, 2
        // Predicated region
        $region65: #{model_forward.2} parent=63 // pred_check
          %p875 = pneg %p153
        $region66: #{model_forward.2} parent=63 // pred_check_branch
          %877 = sbr.rel (%p875) target = $region68
        $region67: #{model_forward.2} parent=63 // pred_region
          %p878 = scmp.lt.s32.totalorder %s20, 1
          %s879 = scalar_select %p878, %s20, 1
          %s880 = smul.addr %s879, 2
          %s881 = scalar_lea.vmem %s5, %s880
        $region68: #{model_forward.2} parent=63 // pred_fallthru
          _
      $region64: #{model_forward.2} parent=5 // pred_fallthru
        _
    $region6: #{model_forward.2} parent=1 // loop_footer
      %s18 = sadd.s32 1, %s14
    $region7: #{model_forward.2} parent=1 // loop_footer_branch
      %13 = sbr.rel target = $region3
    $region8: #{model_forward.2} parent=1 // loop_exit
      _
    %882 = vsyncpa [#allocation3], 1
    %s883 = scalar_lea.sflag [#allocation3], 1
    %884 = vsyncpa %s883, 1
    %885 = vsyncpa [#allocation5], 1
    %886 = vsyncpa [#allocation8], 1

// kernel: model_forward.3
$region0: #{model_forward.3}
  #allocation0 [shape = 'u32[]', space=smem, size = 0x4, offset = 0x4, fixed_abs, tag = 'smem constant byte address 0x4 - core index']
  #allocation1 [shape = 'u32[144,128]{1,0:T(1,128)}', space=vmem, size = 0x12000, scoped, tag = 'internal scratch']
  %s0 = inlined_call_operand.vmem [shape: f32[2,1,218], index: 0, kind: input, shape index: {}]
  %s1 = inlined_call_operand.vmem [shape: f32[218,1536], index: 1, kind: input, shape index: {}]
  %s2 = inlined_call_operand.vmem [shape: f32[24,512], index: 2, kind: input, shape index: {}]
  %s3 = inlined_call_operand.vmem [shape: f32[2,12,24], index: 3, kind: input, shape index: {}]
  %s4 = inlined_call_operand.vmem [shape: f32[512,128], index: 4, kind: input, shape index: {}]
  %s5 = inlined_call_operand.vmem [shape: f32[2,1,3], index: 5, kind: input, shape index: {}]
  %s6 = inlined_call_operand.vmem [shape: f32[2,3,512], index: 6, kind: output, shape index: {0}]
  %s7 = inlined_call_operand.vmem [shape: f32[2,5,128], index: 7, kind: output, shape index: {1}]
  %8 = xla_tuple %s6, %s7
  %s9 = sld [smem:[#allocation0]]
  $region65: #{model_forward.3} parent=0
    _
  %s11 = ssub.s32 1, %s9
  %s12 = scalar_select 0, %s11, %s9
  loop: start=0, step=1, limit=4
  $region2: #{model_forward.3} parent=0 // loop_pre_header
    _
  $region3: #{model_forward.3} parent=0 // loop_header
    %s14 = sphi 0, %s18
    %p15 = scmp.ge.s32.totalorder %s14, 4
    %s24 = sphi 0, %s26
    %s27 = sphi 0, %s24
    %s28 = sphi 0, %s27
    %s44 = sphi 0, %s28
    %s48 = sphi 0, %s48
    %s50 = sphi 0, %s48
    %s51 = sphi 0, %s50
    %s65 = sphi 0, %s51
    %s69 = sphi 0, %s69
    %s71 = sphi 0, %s69
    %s72 = sphi 0, %s71
    %s86 = sphi 0, %s72
    %s92 = sphi 0, %s94
    %s95 = sphi 0, %s92
    %s96 = sphi 0, %s95
    %s112 = sphi 0, %s96
    %s116 = sphi 0, %s116
    %s118 = sphi 0, %s116
    %s119 = sphi 0, %s118
    %s133 = sphi 0, %s119
    %s139 = sphi 0, %s141
    %s142 = sphi 0, %s139
    %s143 = sphi 0, %s142
    %s159 = sphi 0, %s143
    %s165 = sphi 0, %s167
    %s168 = sphi 0, %s165
    %s169 = sphi 0, %s168
    %s185 = sphi 0, %s169
    %s191 = sphi 0, %s193
    %s194 = sphi 0, %s191
    %s195 = sphi 0, %s194
    %s211 = sphi 0, %s195
  $region4: #{model_forward.3} parent=0 // loop_header_branch
    %17 = sbr.rel (%p15) target = $region8
  $region5: #{model_forward.3} parent=0 // loop_body
    %s19 = ssub.s32 %s14, 1
    %s20 = ssub.s32 %s14, 2
    %s21 = sadd.s32 %s14, 1
    %s22 = ssub.s32 %s14, %s21
    %p23 = scmp.eq.s32.totalorder %s22, 0
    %s25 = sadd.s32 %s24, 1
    %s26 = scalar_select %p23, %s24, %s25
    %p29 = pneg %p23
    %p30 = scmp.eq.s32.totalorder %s14, 1
    %p31 = por %p29, %p30
    %p32 = scmp.ne.s32.totalorder %s24, %s27
    %p33 = scmp.eq.s32.totalorder %s14, 0
    %p34 = por %p32, %p33
    %p35 = scmp.ne.s32.totalorder %s24, %s27
    %p36 = scmp.eq.s32.totalorder %s19, 1
    %p37 = por %p35, %p36
    %p38 = scmp.ne.s32.totalorder %s27, %s28
    %p39 = scmp.eq.s32.totalorder %s19, 0
    %p40 = por %p38, %p39
    %p41 = scmp.ne.s32.totalorder %s27, %s28
    %p42 = scmp.eq.s32.totalorder %s20, 1
    %p43 = por %p41, %p42
    %p45 = scmp.ne.s32.totalorder %s28, %s44
    %p46 = scmp.eq.s32.totalorder %s20, 0
    %p47 = por %p45, %p46
    %s49 = sadd.s32 %s48, 1
    %p52 = scmp.eq.s32.totalorder %s14, 1
    %p53 = scmp.ne.s32.totalorder %s48, %s50
    %p54 = scmp.eq.s32.totalorder %s14, 0
    %p55 = por %p53, %p54
    %p56 = scmp.ne.s32.totalorder %s48, %s50
    %p57 = scmp.eq.s32.totalorder %s19, 1
    %p58 = por %p56, %p57
    %p59 = scmp.ne.s32.totalorder %s50, %s51
    %p60 = scmp.eq.s32.totalorder %s19, 0
    %p61 = por %p59, %p60
    %p62 = scmp.ne.s32.totalorder %s50, %s51
    %p63 = scmp.eq.s32.totalorder %s20, 1
    %p64 = por %p62, %p63
    %p66 = scmp.ne.s32.totalorder %s51, %s65
    %p67 = scmp.eq.s32.totalorder %s20, 0
    %p68 = por %p66, %p67
    %s70 = sadd.s32 %s69, 1
    %p73 = scmp.eq.s32.totalorder %s14, 1
    %p74 = scmp.ne.s32.totalorder %s69, %s71
    %p75 = scmp.eq.s32.totalorder %s14, 0
    %p76 = por %p74, %p75
    %p77 = scmp.ne.s32.totalorder %s69, %s71
    %p78 = scmp.eq.s32.totalorder %s19, 1
    %p79 = por %p77, %p78
    %p80 = scmp.ne.s32.totalorder %s71, %s72
    %p81 = scmp.eq.s32.totalorder %s19, 0
    %p82 = por %p80, %p81
    %p83 = scmp.ne.s32.totalorder %s71, %s72
    %p84 = scmp.eq.s32.totalorder %s20, 1
    %p85 = por %p83, %p84
    %p87 = scmp.ne.s32.totalorder %s72, %s86
    %p88 = scmp.eq.s32.totalorder %s20, 0
    %p89 = por %p87, %p88
    %s90 = ssub.s32 %s14, %s21
    %p91 = scmp.eq.s32.totalorder %s90, 0
    %s93 = sadd.s32 %s92, 1
    %s94 = scalar_select %p91, %s92, %s93
    %p97 = pneg %p91
    %p98 = scmp.eq.s32.totalorder %s14, 1
    %p99 = por %p97, %p98
    %p100 = scmp.ne.s32.totalorder %s92, %s95
    %p101 = scmp.eq.s32.totalorder %s14, 0
    %p102 = por %p100, %p101
    %p103 = scmp.ne.s32.totalorder %s92, %s95
    %p104 = scmp.eq.s32.totalorder %s19, 1
    %p105 = por %p103, %p104
    %p106 = scmp.ne.s32.totalorder %s95, %s96
    %p107 = scmp.eq.s32.totalorder %s19, 0
    %p108 = por %p106, %p107
    %p109 = scmp.ne.s32.totalorder %s95, %s96
    %p110 = scmp.eq.s32.totalorder %s20, 1
    %p111 = por %p109, %p110
    %p113 = scmp.ne.s32.totalorder %s96, %s112
    %p114 = scmp.eq.s32.totalorder %s20, 0
    %p115 = por %p113, %p114
    %s117 = sadd.s32 %s116, 1
    %p120 = scmp.eq.s32.totalorder %s14, 1
    %p121 = scmp.ne.s32.totalorder %s116, %s118
    %p122 = scmp.eq.s32.totalorder %s14, 0
    %p123 = por %p121, %p122
    %p124 = scmp.ne.s32.totalorder %s116, %s118
    %p125 = scmp.eq.s32.totalorder %s19, 1
    %p126 = por %p124, %p125
    %p127 = scmp.ne.s32.totalorder %s118, %s119
    %p128 = scmp.eq.s32.totalorder %s19, 0
    %p129 = por %p127, %p128
    %p130 = scmp.ne.s32.totalorder %s118, %s119
    %p131 = scmp.eq.s32.totalorder %s20, 1
    %p132 = por %p130, %p131
    %p134 = scmp.ne.s32.totalorder %s119, %s133
    %p135 = scmp.eq.s32.totalorder %s20, 0
    %p136 = por %p134, %p135
    %s137 = ssub.s32 %s14, %s21
    %p138 = scmp.eq.s32.totalorder %s137, 0
    %s140 = sadd.s32 %s139, 1
    %s141 = scalar_select %p138, %s139, %s140
    %p144 = pneg %p138
    %p145 = scmp.eq.s32.totalorder %s14, 1
    %p146 = por %p144, %p145
    %p147 = scmp.ne.s32.totalorder %s139, %s142
    %p148 = scmp.eq.s32.totalorder %s14, 0
    %p149 = por %p147, %p148
    %p150 = scmp.ne.s32.totalorder %s139, %s142
    %p151 = scmp.eq.s32.totalorder %s19, 1
    %p152 = por %p150, %p151
    %p153 = scmp.ne.s32.totalorder %s142, %s143
    %p154 = scmp.eq.s32.totalorder %s19, 0
    %p155 = por %p153, %p154
    %p156 = scmp.ne.s32.totalorder %s142, %s143
    %p157 = scmp.eq.s32.totalorder %s20, 1
    %p158 = por %p156, %p157
    %p160 = scmp.ne.s32.totalorder %s143, %s159
    %p161 = scmp.eq.s32.totalorder %s20, 0
    %p162 = por %p160, %p161
    %s163 = ssub.s32 %s14, %s21
    %p164 = scmp.eq.s32.totalorder %s163, 0
    %s166 = sadd.s32 %s165, 1
    %s167 = scalar_select %p164, %s165, %s166
    %p170 = pneg %p164
    %p171 = scmp.eq.s32.totalorder %s14, 1
    %p172 = por %p170, %p171
    %p173 = scmp.ne.s32.totalorder %s165, %s168
    %p174 = scmp.eq.s32.totalorder %s14, 0
    %p175 = por %p173, %p174
    %p176 = scmp.ne.s32.totalorder %s165, %s168
    %p177 = scmp.eq.s32.totalorder %s19, 1
    %p178 = por %p176, %p177
    %p179 = scmp.ne.s32.totalorder %s168, %s169
    %p180 = scmp.eq.s32.totalorder %s19, 0
    %p181 = por %p179, %p180
    %p182 = scmp.ne.s32.totalorder %s168, %s169
    %p183 = scmp.eq.s32.totalorder %s20, 1
    %p184 = por %p182, %p183
    %p186 = scmp.ne.s32.totalorder %s169, %s185
    %p187 = scmp.eq.s32.totalorder %s20, 0
    %p188 = por %p186, %p187
    %s189 = ssub.s32 %s14, %s21
    %p190 = scmp.eq.s32.totalorder %s189, 0
    %s192 = sadd.s32 %s191, 1
    %s193 = scalar_select %p190, %s191, %s192
    %p196 = pneg %p190
    %p197 = scmp.eq.s32.totalorder %s14, 1
    %p198 = por %p196, %p197
    %p199 = scmp.ne.s32.totalorder %s191, %s194
    %p200 = scmp.eq.s32.totalorder %s14, 0
    %p201 = por %p199, %p200
    %p202 = scmp.ne.s32.totalorder %s191, %s194
    %p203 = scmp.eq.s32.totalorder %s19, 1
    %p204 = por %p202, %p203
    %p205 = scmp.ne.s32.totalorder %s194, %s195
    %p206 = scmp.eq.s32.totalorder %s19, 0
    %p207 = por %p205, %p206
    %p208 = scmp.ne.s32.totalorder %s194, %s195
    %p209 = scmp.eq.s32.totalorder %s20, 1
    %p210 = por %p208, %p209
    %p212 = scmp.ne.s32.totalorder %s195, %s211
    %p213 = scmp.eq.s32.totalorder %s20, 0
    %p214 = por %p212, %p213
    %p215 = scmp.le.s32.totalorder 1, %s14
    %p216 = scmp.lt.s32.totalorder %s14, 3
    %p217 = pnand %p215, %p216
    %p218 = pneg %p217
    // Predicated region
    $region9: #{model_forward.3} parent=5 // pred_check
      _
    $region10: #{model_forward.3} parent=5 // pred_check_branch
      %220 = sbr.rel (%p217) target = $region12
    $region11: #{model_forward.3} parent=5 // pred_region
      %s221 = ssub.s32 %s14, 1
      // Predicated region
      $region13: #{model_forward.3} parent=11 // pred_check
        %p222 = pneg %p61
      $region14: #{model_forward.3} parent=11 // pred_check_branch
        %224 = sbr.rel (%p222) target = $region16
      $region15: #{model_forward.3} parent=11 // pred_region
        _
      $region16: #{model_forward.3} parent=11 // pred_fallthru
        _
      // Predicated region
      $region17: #{model_forward.3} parent=11 // pred_check
        %p225 = pneg %p82
      $region18: #{model_forward.3} parent=11 // pred_check_branch
        %227 = sbr.rel (%p225) target = $region20
      $region19: #{model_forward.3} parent=11 // pred_region
        _
      $region20: #{model_forward.3} parent=11 // pred_fallthru
        _
      // Predicated region
      $region21: #{model_forward.3} parent=11 // pred_check
        %p228 = pneg %p129
      $region22: #{model_forward.3} parent=11 // pred_check_branch
        %230 = sbr.rel (%p228) target = $region24
      $region23: #{model_forward.3} parent=11 // pred_region
        _
      $region24: #{model_forward.3} parent=11 // pred_fallthru
        _
    $region12: #{model_forward.3} parent=5 // pred_fallthru
      _
    %p231 = scmp.lt.s32.totalorder %s14, 2
    // Predicated region
    $region25: #{model_forward.3} parent=5 // pred_check
      %p232 = pneg %p231
    $region26: #{model_forward.3} parent=5 // pred_check_branch
      %234 = sbr.rel (%p232) target = $region28
    $region27: #{model_forward.3} parent=5 // pred_region
      // Predicated region
      $region29: #{model_forward.3} parent=27 // pred_check
        %p235 = pneg %p34
      $region30: #{model_forward.3} parent=27 // pred_check_branch
        %237 = sbr.rel (%p235) target = $region32
      $region31: #{model_forward.3} parent=27 // pred_region
        %p238 = scmp.lt.s32.totalorder %s14, 1
        %s239 = scalar_select %p238, %s14, 1
        %s240 = smul.addr %s239, 2
        %s241 = scalar_lea.vmem %s0, %s240
      $region32: #{model_forward.3} parent=27 // pred_fallthru
        _
      // Predicated region
      $region33: #{model_forward.3} parent=27 // pred_check
        %p242 = pneg %p102
      $region34: #{model_forward.3} parent=27 // pred_check_branch
        %244 = sbr.rel (%p242) target = $region36
      $region35: #{model_forward.3} parent=27 // pred_region
        %p245 = scmp.lt.s32.totalorder %s14, 1
        %s246 = scalar_select %p245, %s14, 1
        %s247 = smul.addr %s246, 2
        %s248 = smul.addr %s247, 8
        %s249 = scalar_lea.vmem %s3, %s248
      $region36: #{model_forward.3} parent=27 // pred_fallthru
        _
      // Predicated region
      $region37: #{model_forward.3} parent=27 // pred_check
        %p250 = pneg %p149
      $region38: #{model_forward.3} parent=27 // pred_check_branch
        %252 = sbr.rel (%p250) target = $region40
      $region39: #{model_forward.3} parent=27 // pred_region
        %p253 = scmp.lt.s32.totalorder %s14, 1
        %s254 = scalar_select %p253, %s14, 1
        %s255 = scalar_lea.vmem %s5, %s254
      $region40: #{model_forward.3} parent=27 // pred_fallthru
        _
    $region28: #{model_forward.3} parent=5 // pred_fallthru
      _
    %p256 = scmp.le.s32.totalorder 1, %s14
    %p257 = scmp.lt.s32.totalorder %s14, 3
    %p258 = pnand %p256, %p257
    %p259 = pneg %p258
    // Predicated region
    $region41: #{model_forward.3} parent=5 // pred_check
      _
    $region42: #{model_forward.3} parent=5 // pred_check_branch
      %261 = sbr.rel (%p258) target = $region44
    $region43: #{model_forward.3} parent=5 // pred_region
      %s262 = ssub.s32 %s14, 1
      %p263 = scmp.lt.s32.totalorder %s19, 1
      %s264 = scalar_select %p263, %s19, 1
      %s265 = smul.addr %s264, 2
      %s266 = scalar_lea.vmem %s0, %s265
      %p267 = pneg %p40
      %p268 = pneg %p37
      %p269 = pneg %p61
      %p270 = pneg %p58
      %p271 = pneg %p82
      %p272 = pneg %p79
      %p273 = scmp.lt.s32.totalorder %s19, 1
      %s274 = scalar_select %p273, %s19, 1
      %s275 = smul.addr %s274, 2
      %s276 = smul.addr %s275, 8
      %s277 = scalar_lea.vmem %s3, %s276
      %p278 = pneg %p108
      %p279 = pneg %p105
      %p280 = pneg %p129
      %p281 = pneg %p126
      %p282 = scmp.lt.s32.totalorder %s19, 1
      %s283 = scalar_select %p282, %s19, 1
      %s284 = scalar_lea.vmem %s5, %s283
      %p285 = pneg %p155
      %p286 = pneg %p152
      %p287 = pneg %p181
      %p288 = pneg %p178
      %p289 = scmp.lt.s32.totalorder %s19, 1
      %s290 = scalar_select %p289, %s19, 1
      %s291 = smul.addr %s290, 4
      %s292 = smul.addr %s291, 4
      %s293 = scalar_lea.vmem %s6, %s292
      %p294 = pneg %p207
      %p295 = pneg %p204
      %p296 = scmp.lt.s32.totalorder %s19, 1
      %s297 = scalar_select %p296, %s19, 1
      %s298 = smul.addr %s297, 8
      %s299 = scalar_lea.vmem %s7, %s298
      %p300 = scmp.lt.s32.totalorder %s19, 1
      %s301 = scalar_select %p300, %s19, 1
      %s302 = smul.addr %s301, 2
      %s303 = scalar_lea.vmem %s0, %s302
      %p304 = scmp.lt.s32.totalorder %s19, 1
      %s305 = scalar_select %p304, %s19, 1
      %s306 = smul.addr %s305, 2
      %s307 = smul.addr %s306, 8
      %s308 = scalar_lea.vmem %s3, %s307
      %p309 = scmp.lt.s32.totalorder %s19, 1
      %s310 = scalar_select %p309, %s19, 1
      %s311 = scalar_lea.vmem %s5, %s310
      %p312 = scmp.lt.s32.totalorder %s19, 1
      %s313 = scalar_select %p312, %s19, 1
      %s314 = smul.addr %s313, 4
      %s315 = smul.addr %s314, 4
      %s316 = scalar_lea.vmem %s6, %s315
      %p317 = scmp.lt.s32.totalorder %s19, 1
      %s318 = scalar_select %p317, %s19, 1
      %s319 = smul.addr %s318, 8
      %s320 = scalar_lea.vmem %s7, %s319
      %v321 = vld [vmem:[%s303] sm:$0x3]
      %v322 = vld [vmem:[%s1] sm:$0xff]
      %v323 = vld [vmem:[%s1 + $0x8] sm:$0xff]
      %v324 = vld [vmem:[%s1 + $0x10] sm:$0xff]
      %v325 = vld [vmem:[%s1 + $0x18] sm:$0xff]
      %v326 = vld [vmem:[%s1 + $0x20] sm:$0xff]
      %v327 = vld [vmem:[%s1 + $0x28] sm:$0xff]
      %v328 = vld [vmem:[%s1 + $0x30] sm:$0xff]
      %v329 = vld [vmem:[%s1 + $0x38] sm:$0xff]
      %v330 = vld [vmem:[%s1 + $0x40] sm:$0xff]
      %v331 = vld [vmem:[%s1 + $0x48] sm:$0xff]
      %v332 = vld [vmem:[%s1 + $0x50] sm:$0xff]
      %v333 = vld [vmem:[%s1 + $0x58] sm:$0xff]
      %v334 = vld [vmem:[%s1 + $0x60] sm:$0xff]
      %v335 = vld [vmem:[%s1 + $0x68] sm:$0xff]
      %v336 = vld [vmem:[%s1 + $0x70] sm:$0xff]
      %v337 = vld [vmem:[%s1 + $0x78] sm:$0xff]
      %v338 = vld [vmem:[%s1 + $0x80] sm:$0xff]
      %v339 = vld [vmem:[%s1 + $0x88] sm:$0xff]
      %v340 = vld [vmem:[%s1 + $0x90] sm:$0xff]
      %v341 = vld [vmem:[%s1 + $0x98] sm:$0xff]
      %v342 = vld [vmem:[%s1 + $0xa0] sm:$0xff]
      %v343 = vld [vmem:[%s1 + $0xa8] sm:$0xff]
      %v344 = vld [vmem:[%s1 + $0xb0] sm:$0xff]
      %v345 = vld [vmem:[%s1 + $0xb8] sm:$0xff]
      %v346 = vld [vmem:[%s1 + $0xc0] sm:$0xff]
      %v347 = vld [vmem:[%s1 + $0xc8] sm:$0xff]
      %v348 = vld [vmem:[%s1 + $0xd0] sm:$0xff]
      %v349 = vld [vmem:[%s1 + $0xd8] sm:$0xff]
      %v350 = vld [vmem:[%s1 + $0xe0] sm:$0xff]
      %v351 = vld [vmem:[%s1 + $0xe8] sm:$0xff]
      %v352 = vld [vmem:[%s1 + $0xf0] sm:$0xff]
      %v353 = vld [vmem:[%s1 + $0xf8] sm:$0xff]
      %v354 = vld [vmem:[%s1 + $0x100] sm:$0xff]
      %v355 = vld [vmem:[%s1 + $0x108] sm:$0xff]
      %v356 = vld [vmem:[%s1 + $0x110] sm:$0xff]
      %v357 = vld [vmem:[%s1 + $0x118] sm:$0xff]
      %v358 = vld [vmem:[%s1 + $0x120] sm:$0xff]
      %v359 = vld [vmem:[%s1 + $0x128] sm:$0xff]
      %v360 = vld [vmem:[%s1 + $0x130] sm:$0xff]
      %v361 = vld [vmem:[%s1 + $0x138] sm:$0xff]
      %v362 = vld [vmem:[%s1 + $0x140] sm:$0xff]
      %v363 = vld [vmem:[%s1 + $0x148] sm:$0xff]
      %v364 = vld [vmem:[%s1 + $0x150] sm:$0xff]
      %v365 = vld [vmem:[%s1 + $0x158] sm:$0xff]
      %v366 = vld [vmem:[%s1 + $0x160] sm:$0xff]
      %v367 = vld [vmem:[%s1 + $0x168] sm:$0xff]
      %v368 = vld [vmem:[%s1 + $0x170] sm:$0xff]
      %v369 = vld [vmem:[%s1 + $0x178] sm:$0xff]
      %v370 = vld [vmem:[%s1 + $0x180] sm:$0xff]
      %v371 = vld [vmem:[%s1 + $0x188] sm:$0xff]
      %v372 = vld [vmem:[%s1 + $0x190] sm:$0xff]
      %v373 = vld [vmem:[%s1 + $0x198] sm:$0xff]
      %v374 = vld [vmem:[%s1 + $0x1a0] sm:$0xff]
      %v375 = vld [vmem:[%s1 + $0x1a8] sm:$0xff]
      %v376 = vld [vmem:[%s1 + $0x1b0] sm:$0xff]
      %v377 = vld [vmem:[%s1 + $0x1b8] sm:$0xff]
      %v378 = vld [vmem:[%s1 + $0x1c0] sm:$0xff]
      %v379 = vld [vmem:[%s1 + $0x1c8] sm:$0xff]
      %v380 = vld [vmem:[%s1 + $0x1d0] sm:$0xff]
      %v381 = vld [vmem:[%s1 + $0x1d8] sm:$0xff]
      %v382 = vld [vmem:[%s1 + $0x1e0] sm:$0xff]
      %v383 = vld [vmem:[%s1 + $0x1e8] sm:$0xff]
      %v384 = vld [vmem:[%s1 + $0x1f0] sm:$0xff]
      %v385 = vld [vmem:[%s1 + $0x1f8] sm:$0xff]
      %v386 = vld [vmem:[%s1 + $0x200] sm:$0xff]
      %v387 = vld [vmem:[%s1 + $0x208] sm:$0xff]
      %v388 = vld [vmem:[%s1 + $0x210] sm:$0xff]
      %v389 = vld [vmem:[%s1 + $0x218] sm:$0xff]
      %v390 = vld [vmem:[%s1 + $0x220] sm:$0xff]
      %v391 = vld [vmem:[%s1 + $0x228] sm:$0xff]
      %v392 = vld [vmem:[%s1 + $0x230] sm:$0xff]
      %v393 = vld [vmem:[%s1 + $0x238] sm:$0xff]
      %v394 = vld [vmem:[%s1 + $0x240] sm:$0xff]
      %v395 = vld [vmem:[%s1 + $0x248] sm:$0xff]
      %v396 = vld [vmem:[%s1 + $0x250] sm:$0xff]
      %v397 = vld [vmem:[%s1 + $0x258] sm:$0xff]
      %v398 = vld [vmem:[%s1 + $0x260] sm:$0xff]
      %v399 = vld [vmem:[%s1 + $0x268] sm:$0xff]
      %v400 = vld [vmem:[%s1 + $0x270] sm:$0xff]
      %v401 = vld [vmem:[%s1 + $0x278] sm:$0xff]
      %v402 = vld [vmem:[%s1 + $0x280] sm:$0xff]
      %v403 = vld [vmem:[%s1 + $0x288] sm:$0xff]
      %v404 = vld [vmem:[%s1 + $0x290] sm:$0xff]
      %v405 = vld [vmem:[%s1 + $0x298] sm:$0xff]
      %v406 = vld [vmem:[%s1 + $0x2a0] sm:$0xff]
      %v407 = vld [vmem:[%s1 + $0x2a8] sm:$0xff]
      %v408 = vld [vmem:[%s1 + $0x2b0] sm:$0xff]
      %v409 = vld [vmem:[%s1 + $0x2b8] sm:$0xff]
      %v410 = vld [vmem:[%s1 + $0x2c0] sm:$0xff]
      %v411 = vld [vmem:[%s1 + $0x2c8] sm:$0xff]
      %v412 = vld [vmem:[%s1 + $0x2d0] sm:$0xff]
      %v413 = vld [vmem:[%s1 + $0x2d8] sm:$0xff]
      %v414 = vld [vmem:[%s1 + $0x2e0] sm:$0xff]
      %v415 = vld [vmem:[%s1 + $0x2e8] sm:$0xff]
      %v416 = vld [vmem:[%s1 + $0x2f0] sm:$0xff]
      %v417 = vld [vmem:[%s1 + $0x2f8] sm:$0xff]
      %v418 = vld [vmem:[%s1 + $0x300] sm:$0xff]
      %v419 = vld [vmem:[%s1 + $0x308] sm:$0xff]
      %v420 = vld [vmem:[%s1 + $0x310] sm:$0xff]
      %v421 = vld [vmem:[%s1 + $0x318] sm:$0xff]
      %v422 = vld [vmem:[%s1 + $0x320] sm:$0xff]
      %v423 = vld [vmem:[%s1 + $0x328] sm:$0xff]
      %v424 = vld [vmem:[%s1 + $0x330] sm:$0xff]
      %v425 = vld [vmem:[%s1 + $0x338] sm:$0xff]
      %v426 = vld [vmem:[%s1 + $0x340] sm:$0xff]
      %v427 = vld [vmem:[%s1 + $0x348] sm:$0xff]
      %v428 = vld [vmem:[%s1 + $0x350] sm:$0xff]
      %v429 = vld [vmem:[%s1 + $0x358] sm:$0xff]
      %v430 = vld [vmem:[%s1 + $0x360] sm:$0xff]
      %v431 = vld [vmem:[%s1 + $0x368] sm:$0xff]
      %v432 = vld [vmem:[%s1 + $0x370] sm:$0xff]
      %v433 = vld [vmem:[%s1 + $0x378] sm:$0xff]
      %v434 = vld [vmem:[%s1 + $0x380] sm:$0xff]
      %v435 = vld [vmem:[%s1 + $0x388] sm:$0xff]
      %v436 = vld [vmem:[%s1 + $0x390] sm:$0xff]
      %v437 = vld [vmem:[%s1 + $0x398] sm:$0xff]
      %v438 = vld [vmem:[%s1 + $0x3a0] sm:$0xff]
      %v439 = vld [vmem:[%s1 + $0x3a8] sm:$0xff]
      %v440 = vld [vmem:[%s1 + $0x3b0] sm:$0xff]
      %v441 = vld [vmem:[%s1 + $0x3b8] sm:$0xff]
      %v442 = vld [vmem:[%s1 + $0x3c0] sm:$0xff]
      %v443 = vld [vmem:[%s1 + $0x3c8] sm:$0xff]
      %v444 = vld [vmem:[%s1 + $0x3d0] sm:$0xff]
      %v445 = vld [vmem:[%s1 + $0x3d8] sm:$0xff]
      %v446 = vld [vmem:[%s1 + $0x3e0] sm:$0xff]
      %v447 = vld [vmem:[%s1 + $0x3e8] sm:$0xff]
      %v448 = vld [vmem:[%s1 + $0x3f0] sm:$0xff]
      %v449 = vld [vmem:[%s1 + $0x3f8] sm:$0xff]
      %v450 = vld [vmem:[%s1 + $0x400] sm:$0xff]
      %v451 = vld [vmem:[%s1 + $0x408] sm:$0xff]
      %v452 = vld [vmem:[%s1 + $0x410] sm:$0xff]
      %v453 = vld [vmem:[%s1 + $0x418] sm:$0xff]
      %v454 = vld [vmem:[%s1 + $0x420] sm:$0xff]
      %v455 = vld [vmem:[%s1 + $0x428] sm:$0xff]
      %v456 = vld [vmem:[%s1 + $0x430] sm:$0xff]
      %v457 = vld [vmem:[%s1 + $0x438] sm:$0xff]
      %v458 = vld [vmem:[%s1 + $0x440] sm:$0xff]
      %v459 = vld [vmem:[%s1 + $0x448] sm:$0xff]
      %v460 = vld [vmem:[%s1 + $0x450] sm:$0xff]
      %v461 = vld [vmem:[%s1 + $0x458] sm:$0xff]
      %v462 = vld [vmem:[%s1 + $0x460] sm:$0xff]
      %v463 = vld [vmem:[%s1 + $0x468] sm:$0xff]
      %v464 = vld [vmem:[%s1 + $0x470] sm:$0xff]
      %v465 = vld [vmem:[%s1 + $0x478] sm:$0xff]
      %v466 = vld [vmem:[%s1 + $0x480] sm:$0xff]
      %v467 = vld [vmem:[%s1 + $0x488] sm:$0xff]
      %v468 = vld [vmem:[%s1 + $0x490] sm:$0xff]
      %v469 = vld [vmem:[%s1 + $0x498] sm:$0xff]
      %v470 = vld [vmem:[%s1 + $0x4a0] sm:$0xff]
      %v471 = vld [vmem:[%s1 + $0x4a8] sm:$0xff]
      %v472 = vld [vmem:[%s1 + $0x4b0] sm:$0xff]
      %v473 = vld [vmem:[%s1 + $0x4b8] sm:$0xff]
      %v474 = vld [vmem:[%s1 + $0x4c0] sm:$0xff]
      %v475 = vld [vmem:[%s1 + $0x4c8] sm:$0xff]
      %v476 = vld [vmem:[%s1 + $0x4d0] sm:$0xff]
      %v477 = vld [vmem:[%s1 + $0x4d8] sm:$0xff]
      %v478 = vld [vmem:[%s1 + $0x4e0] sm:$0xff]
      %v479 = vld [vmem:[%s1 + $0x4e8] sm:$0xff]
      %v480 = vld [vmem:[%s1 + $0x4f0] sm:$0xff]
      %v481 = vld [vmem:[%s1 + $0x4f8] sm:$0xff]
      %v482 = vld [vmem:[%s1 + $0x500] sm:$0xff]
      %v483 = vld [vmem:[%s1 + $0x508] sm:$0xff]
      %v484 = vld [vmem:[%s1 + $0x510] sm:$0xff]
      %v485 = vld [vmem:[%s1 + $0x518] sm:$0xff]
      %v486 = vld [vmem:[%s1 + $0x520] sm:$0xff]
      %v487 = vld [vmem:[%s1 + $0x528] sm:$0xff]
      %v488 = vld [vmem:[%s1 + $0x530] sm:$0xff]
      %v489 = vld [vmem:[%s1 + $0x538] sm:$0xff]
      %v490 = vld [vmem:[%s1 + $0x540] sm:$0xff]
      %v491 = vld [vmem:[%s1 + $0x548] sm:$0xff]
      %v492 = vld [vmem:[%s1 + $0x550] sm:$0xff]
      %v493 = vld [vmem:[%s1 + $0x558] sm:$0xff]
      %v494 = vld [vmem:[%s1 + $0x560] sm:$0xff]
      %v495 = vld [vmem:[%s1 + $0x568] sm:$0xff]
      %v496 = vld [vmem:[%s1 + $0x570] sm:$0xff]
      %v497 = vld [vmem:[%s1 + $0x578] sm:$0xff]
      %v498 = vld [vmem:[%s1 + $0x580] sm:$0xff]
      %v499 = vld [vmem:[%s1 + $0x588] sm:$0xff]
      %v500 = vld [vmem:[%s1 + $0x590] sm:$0xff]
      %v501 = vld [vmem:[%s1 + $0x598] sm:$0xff]
      %v502 = vld [vmem:[%s1 + $0x5a0] sm:$0xff]
      %v503 = vld [vmem:[%s1 + $0x5a8] sm:$0xff]
      %v504 = vld [vmem:[%s1 + $0x5b0] sm:$0xff]
      %v505 = vld [vmem:[%s1 + $0x5b8] sm:$0xff]
      %v506 = vld [vmem:[%s1 + $0x5c0] sm:$0xff]
      %v507 = vld [vmem:[%s1 + $0x5c8] sm:$0xff]
      %v508 = vld [vmem:[%s1 + $0x5d0] sm:$0xff]
      %v509 = vld [vmem:[%s1 + $0x5d8] sm:$0xff]
      %v510 = vld [vmem:[%s1 + $0x5e0] sm:$0xff]
      %v511 = vld [vmem:[%s1 + $0x5e8] sm:$0xff]
      %v512 = vld [vmem:[%s1 + $0x5f0] sm:$0xff]
      %v513 = vld [vmem:[%s1 + $0x5f8] sm:$0xff]
      %v514 = vld [vmem:[%s1 + $0x600] sm:$0xff]
      %v515 = vld [vmem:[%s1 + $0x608] sm:$0xff]
      %v516 = vld [vmem:[%s1 + $0x610] sm:$0xff]
      %v517 = vld [vmem:[%s1 + $0x618] sm:$0xff]
      %v518 = vld [vmem:[%s1 + $0x620] sm:$0xff]
      %v519 = vld [vmem:[%s1 + $0x628] sm:$0xff]
      %v520 = vld [vmem:[%s1 + $0x630] sm:$0xff]
      %v521 = vld [vmem:[%s1 + $0x638] sm:$0xff]
      %v522 = vld [vmem:[%s1 + $0x640] sm:$0xff]
      %v523 = vld [vmem:[%s1 + $0x648] sm:$0xff]
      %v524 = vld [vmem:[%s1 + $0x650] sm:$0xff]
      %v525 = vld [vmem:[%s1 + $0x658] sm:$0xff]
      %v526 = vld [vmem:[%s1 + $0x660] sm:$0xff]
      %v527 = vld [vmem:[%s1 + $0x668] sm:$0xff]
      %v528 = vld [vmem:[%s1 + $0x670] sm:$0xff]
      %v529 = vld [vmem:[%s1 + $0x678] sm:$0xff]
      %v530 = vld [vmem:[%s1 + $0x680] sm:$0xff]
      %v531 = vld [vmem:[%s1 + $0x688] sm:$0xff]
      %v532 = vld [vmem:[%s1 + $0x690] sm:$0xff]
      %v533 = vld [vmem:[%s1 + $0x698] sm:$0xff]
      %v534 = vld [vmem:[%s1 + $0x6a0] sm:$0xff]
      %v535 = vld [vmem:[%s1 + $0x6a8] sm:$0xff]
      %v536 = vld [vmem:[%s1 + $0x6b0] sm:$0xff]
      %v537 = vld [vmem:[%s1 + $0x6b8] sm:$0xff]
      %v538 = vld [vmem:[%s1 + $0x6c0] sm:$0xff]
      %v539 = vld [vmem:[%s1 + $0x6c8] sm:$0xff]
      %v540 = vld [vmem:[%s1 + $0x6d0] sm:$0xff]
      %v541 = vld [vmem:[%s1 + $0x6d8] sm:$0xff]
      %v542 = vld [vmem:[%s1 + $0x6e0] sm:$0xff]
      %v543 = vld [vmem:[%s1 + $0x6e8] sm:$0xff]
      %v544 = vld [vmem:[%s1 + $0x6f0] sm:$0xff]
      %v545 = vld [vmem:[%s1 + $0x6f8] sm:$0xff]
      %v546 = vld [vmem:[%s1 + $0x700] sm:$0xff]
      %v547 = vld [vmem:[%s1 + $0x708] sm:$0xff]
      %v548 = vld [vmem:[%s1 + $0x710] sm:$0xff]
      %v549 = vld [vmem:[%s1 + $0x718] sm:$0xff]
      %v550 = vld [vmem:[%s1 + $0x720] sm:$0xff]
      %v551 = vld [vmem:[%s1 + $0x728] sm:$0xff]
      %v552 = vld [vmem:[%s1 + $0x730] sm:$0xff]
      %v553 = vld [vmem:[%s1 + $0x738] sm:$0xff]
      %v554 = vld [vmem:[%s1 + $0x740] sm:$0xff]
      %v555 = vld [vmem:[%s1 + $0x748] sm:$0xff]
      %v556 = vld [vmem:[%s1 + $0x750] sm:$0xff]
      %v557 = vld [vmem:[%s1 + $0x758] sm:$0xff]
      %v558 = vld [vmem:[%s1 + $0x760] sm:$0xff]
      %v559 = vld [vmem:[%s1 + $0x768] sm:$0xff]
      %v560 = vld [vmem:[%s1 + $0x770] sm:$0xff]
      %v561 = vld [vmem:[%s1 + $0x778] sm:$0xff]
      %v562 = vld [vmem:[%s1 + $0x780] sm:$0xff]
      %v563 = vld [vmem:[%s1 + $0x788] sm:$0xff]
      %v564 = vld [vmem:[%s1 + $0x790] sm:$0xff]
      %v565 = vld [vmem:[%s1 + $0x798] sm:$0xff]
      %v566 = vld [vmem:[%s1 + $0x7a0] sm:$0xff]
      %v567 = vld [vmem:[%s1 + $0x7a8] sm:$0xff]
      %v568 = vld [vmem:[%s1 + $0x7b0] sm:$0xff]
      %v569 = vld [vmem:[%s1 + $0x7b8] sm:$0xff]
      %v570 = vld [vmem:[%s1 + $0x7c0] sm:$0xff]
      %v571 = vld [vmem:[%s1 + $0x7c8] sm:$0xff]
      %v572 = vld [vmem:[%s1 + $0x7d0] sm:$0xff]
      %v573 = vld [vmem:[%s1 + $0x7d8] sm:$0xff]
      %v574 = vld [vmem:[%s1 + $0x7e0] sm:$0xff]
      %v575 = vld [vmem:[%s1 + $0x7e8] sm:$0xff]
      %v576 = vld [vmem:[%s1 + $0x7f0] sm:$0xff]
      %v577 = vld [vmem:[%s1 + $0x7f8] sm:$0xff]
      %v578 = vld [vmem:[%s1 + $0x800] sm:$0xff]
      %v579 = vld [vmem:[%s1 + $0x808] sm:$0xff]
      %v580 = vld [vmem:[%s1 + $0x810] sm:$0xff]
      %v581 = vld [vmem:[%s1 + $0x818] sm:$0xff]
      %v582 = vld [vmem:[%s1 + $0x820] sm:$0xff]
      %v583 = vld [vmem:[%s1 + $0x828] sm:$0xff]
      %v584 = vld [vmem:[%s1 + $0x830] sm:$0xff]
      %v585 = vld [vmem:[%s1 + $0x838] sm:$0xff]
      %v586 = vld [vmem:[%s1 + $0x840] sm:$0xff]
      %v587 = vld [vmem:[%s1 + $0x848] sm:$0xff]
      %v588 = vld [vmem:[%s1 + $0x850] sm:$0xff]
      %v589 = vld [vmem:[%s1 + $0x858] sm:$0xff]
      %v590 = vld [vmem:[%s1 + $0x860] sm:$0xff]
      %v591 = vld [vmem:[%s1 + $0x868] sm:$0xff]
      %v592 = vld [vmem:[%s1 + $0x870] sm:$0xff]
      %v593 = vld [vmem:[%s1 + $0x878] sm:$0xff]
      %v594 = vld [vmem:[%s1 + $0x880] sm:$0xff]
      %v595 = vld [vmem:[%s1 + $0x888] sm:$0xff]
      %v596 = vld [vmem:[%s1 + $0x890] sm:$0xff]
      %v597 = vld [vmem:[%s1 + $0x898] sm:$0xff]
      %v598 = vld [vmem:[%s1 + $0x8a0] sm:$0xff]
      %v599 = vld [vmem:[%s1 + $0x8a8] sm:$0xff]
      %v600 = vld [vmem:[%s1 + $0x8b0] sm:$0xff]
      %v601 = vld [vmem:[%s1 + $0x8b8] sm:$0xff]
      %v602 = vld [vmem:[%s1 + $0x8c0] sm:$0xff]
      %v603 = vld [vmem:[%s1 + $0x8c8] sm:$0xff]
      %v604 = vld [vmem:[%s1 + $0x8d0] sm:$0xff]
      %v605 = vld [vmem:[%s1 + $0x8d8] sm:$0xff]
      %v606 = vld [vmem:[%s1 + $0x8e0] sm:$0xff]
      %v607 = vld [vmem:[%s1 + $0x8e8] sm:$0xff]
      %v608 = vld [vmem:[%s1 + $0x8f0] sm:$0xff]
      %v609 = vld [vmem:[%s1 + $0x8f8] sm:$0xff]
      %v610 = vld [vmem:[%s1 + $0x900] sm:$0xff]
      %v611 = vld [vmem:[%s1 + $0x908] sm:$0xff]
      %v612 = vld [vmem:[%s1 + $0x910] sm:$0xff]
      %v613 = vld [vmem:[%s1 + $0x918] sm:$0xff]
      %v614 = vld [vmem:[%s1 + $0x920] sm:$0xff]
      %v615 = vld [vmem:[%s1 + $0x928] sm:$0xff]
      %v616 = vld [vmem:[%s1 + $0x930] sm:$0xff]
      %v617 = vld [vmem:[%s1 + $0x938] sm:$0xff]
      %v618 = vld [vmem:[%s1 + $0x940] sm:$0xff]
      %v619 = vld [vmem:[%s1 + $0x948] sm:$0xff]
      %v620 = vld [vmem:[%s1 + $0x950] sm:$0xff]
      %v621 = vld [vmem:[%s1 + $0x958] sm:$0xff]
      %v622 = vld [vmem:[%s1 + $0x960] sm:$0xff]
      %v623 = vld [vmem:[%s1 + $0x968] sm:$0xff]
      %v624 = vld [vmem:[%s1 + $0x970] sm:$0xff]
      %v625 = vld [vmem:[%s1 + $0x978] sm:$0xff]
      %v626 = vld [vmem:[%s1 + $0x980] sm:$0xff]
      %v627 = vld [vmem:[%s1 + $0x988] sm:$0xff]
      %v628 = vld [vmem:[%s1 + $0x990] sm:$0xff]
      %v629 = vld [vmem:[%s1 + $0x998] sm:$0xff]
      %v630 = vld [vmem:[%s1 + $0x9a0] sm:$0xff]
      %v631 = vld [vmem:[%s1 + $0x9a8] sm:$0xff]
      %v632 = vld [vmem:[%s1 + $0x9b0] sm:$0xff]
      %v633 = vld [vmem:[%s1 + $0x9b8] sm:$0xff]
      %v634 = vld [vmem:[%s1 + $0x9c0] sm:$0xff]
      %v635 = vld [vmem:[%s1 + $0x9c8] sm:$0xff]
      %v636 = vld [vmem:[%s1 + $0x9d0] sm:$0xff]
      %v637 = vld [vmem:[%s1 + $0x9d8] sm:$0xff]
      %v638 = vld [vmem:[%s1 + $0x9e0] sm:$0xff]
      %v639 = vld [vmem:[%s1 + $0x9e8] sm:$0xff]
      %v640 = vld [vmem:[%s1 + $0x9f0] sm:$0xff]
      %v641 = vld [vmem:[%s1 + $0x9f8] sm:$0xff]
      %v642 = vld [vmem:[%s1 + $0xa00] sm:$0xff]
      %v643 = vld [vmem:[%s1 + $0xa08] sm:$0xff]
      %v644 = vld [vmem:[%s1 + $0xa10] sm:$0xff]
      %v645 = vld [vmem:[%s1 + $0xa18] sm:$0xff]
      %v646 = vld [vmem:[%s1 + $0xa20] sm:$0x3]
      %v647 = vld [vmem:[%s1 + $0xa28] sm:$0x3]
      %v648 = vld [vmem:[%s1 + $0xa30] sm:$0x3]
      %v649 = vld [vmem:[%s1 + $0xa38] sm:$0x3]
      %v650 = vld [vmem:[%s1 + $0xa40] sm:$0x3]
      %v651 = vld [vmem:[%s1 + $0xa48] sm:$0x3]
      %v652 = vld [vmem:[%s1 + $0xa50] sm:$0x3]
      %v653 = vld [vmem:[%s1 + $0xa58] sm:$0x3]
      %v654 = vld [vmem:[%s1 + $0xa60] sm:$0x3]
      %v655 = vld [vmem:[%s1 + $0xa68] sm:$0x3]
      %v656 = vld [vmem:[%s1 + $0xa70] sm:$0x3]
      %v657 = vld [vmem:[%s1 + $0xa78] sm:$0x3]
      %v659 = vlaneseq
      %v660 = vshrl.u32 %v659, 7
      %v661 = vsub.s32 0, %v660
      %v662 = vrot.slane %v321, %v661
      %v663 = vlaneseq
      %v664 = vshrl.u32 %v663, 7
      %v665 = vsub.s32 1, %v664
      %v666 = vrot.slane %v321, %v665
      %vm668 = vcmask 736256
      %v669 = vsel %vm668, %v666, 0
      %vm671 = vcmask 1041408
      %v673 = vsel %vm671, %v646, 0
      %v676 = vsel %vm671, %v647, 0
      %v679 = vsel %vm671, %v648, 0
      %v682 = vsel %vm671, %v649, 0
      %v685 = vsel %vm671, %v650, 0
      %v688 = vsel %vm671, %v651, 0
      %v691 = vsel %vm671, %v652, 0
      %v694 = vsel %vm671, %v653, 0
      %v697 = vsel %vm671, %v654, 0
      %v700 = vsel %vm671, %v655, 0
      %v703 = vsel %vm671, %v656, 0
      %v706 = vsel %vm671, %v657, 0
      %708 = vmatprep.subr.mxu0 %v323
      %709 = vmatpush1.msra.mxu0 %v322
      %710 = vmatprep.subr.mxu0 %v335
      %711 = vmatpush1.msra.mxu0 %v334
      %712 = vmatprep.subr.mxu0 %v347
      %713 = vmatpush1.msra.mxu0 %v346
      %714 = vmatprep.subr.mxu0 %v359
      %715 = vmatpush1.msra.mxu0 %v358
      %716 = vmatprep.subr.mxu0 %v371
      %717 = vmatpush1.msra.mxu0 %v370
      %718 = vmatprep.subr.mxu0 %v383
      %719 = vmatpush1.msra.mxu0 %v382
      %720 = vmatprep.subr.mxu0 %v395
      %721 = vmatpush1.msra.mxu0 %v394
      %722 = vmatprep.subr.mxu0 %v407
      %723 = vmatpush1.msra.mxu0 %v406
      %724 = vmatprep.subr.mxu0 %v419
      %725 = vmatpush1.msra.mxu0 %v418
      %726 = vmatprep.subr.mxu0 %v431
      %727 = vmatpush1.msra.mxu0 %v430
      %728 = vmatprep.subr.mxu0 %v443
      %729 = vmatpush1.msra.mxu0 %v442
      %730 = vmatprep.subr.mxu0 %v455
      %731 = vmatpush1.msra.mxu0 %v454
      %732 = vmatprep.subr.mxu0 %v467
      %733 = vmatpush1.msra.mxu0 %v466
      %734 = vmatprep.subr.mxu0 %v479
      %735 = vmatpush1.msra.mxu0 %v478
      %736 = vmatprep.subr.mxu0 %v491
      %737 = vmatpush1.msra.mxu0 %v490
      %738 = vmatprep.subr.mxu0 %v503
      %739 = vmatpush1.msra.mxu0 %v502
      %740 = vmatprep.subr.mxu0 %v515
      %741 = vmatpush1.msra.mxu0 %v514
      %742 = vmatprep.subr.mxu0 %v527
      %743 = vmatpush1.msra.mxu0 %v526
      %744 = vmatprep.subr.mxu0 %v539
      %745 = vmatpush1.msra.mxu0 %v538
      %746 = vmatprep.subr.mxu0 %v551
      %747 = vmatpush1.msra.mxu0 %v550
      %748 = vmatprep.subr.mxu0 %v563
      %749 = vmatpush1.msra.mxu0 %v562
      %750 = vmatprep.subr.mxu0 %v575
      %751 = vmatpush1.msra.mxu0 %v574
      %752 = vmatprep.subr.mxu0 %v587
      %753 = vmatpush1.msra.mxu0 %v586
      %754 = vmatprep.subr.mxu0 %v599
      %755 = vmatpush1.msra.mxu0 %v598
      %756 = vmatprep.subr.mxu0 %v611
      %757 = vmatpush1.msra.mxu0 %v610
      %758 = vmatprep.subr.mxu0 %v623
      %759 = vmatpush1.msra.mxu0 %v622
      %760 = vmatprep.subr.mxu0 %v635
      %761 = vmatpush1.msra.mxu0 %v634
      %762 = vmatprep.subr.mxu0 %v676
      %763 = vmatpush1.msra.mxu0 %v673
      %764 = vmatprep.subr.mxu0 0.0
      %765 = vmatpush1.msra.mxu0 0.0
      %766 = vmatprep.subr.mxu0 0.0
      %767 = vmatpush1.msra.mxu0 0.0
      %768 = vmatprep.subr.mxu0 0.0
      %769 = vmatpush1.msra.mxu0 0.0
      %770 = vmatprep.subr.mxu0 0.0
      %771 = vmatpush1.msra.mxu0 0.0
      %772 = vmatprep.mubr.f32.mxu0 %v669
      %773 = vmatmul.mubr.f32.gmra.mrb[0].mxu0 %v662
      %v774 = vpop.f32.mrb[0].mxu0
      %v775 = vadd.f32 0.0, %v774
      %v776 = vpop.f32.mrb[0].mxu0
      %v777 = vadd.f32 0.0, %v776
      %778 = vdwg.mxu0
      %779 = vmatprep.subr.mxu0 %v325
      %780 = vmatpush1.msra.mxu0 %v324
      %781 = vmatprep.subr.mxu0 %v337
      %782 = vmatpush1.msra.mxu0 %v336
      %783 = vmatprep.subr.mxu0 %v349
      %784 = vmatpush1.msra.mxu0 %v348
      %785 = vmatprep.subr.mxu0 %v361
      %786 = vmatpush1.msra.mxu0 %v360
      %787 = vmatprep.subr.mxu0 %v373
      %788 = vmatpush1.msra.mxu0 %v372
      %789 = vmatprep.subr.mxu0 %v385
      %790 = vmatpush1.msra.mxu0 %v384
      %791 = vmatprep.subr.mxu0 %v397
      %792 = vmatpush1.msra.mxu0 %v396
      %793 = vmatprep.subr.mxu0 %v409
      %794 = vmatpush1.msra.mxu0 %v408
      %795 = vmatprep.subr.mxu0 %v421
      %796 = vmatpush1.msra.mxu0 %v420
      %797 = vmatprep.subr.mxu0 %v433
      %798 = vmatpush1.msra.mxu0 %v432
      %799 = vmatprep.subr.mxu0 %v445
      %800 = vmatpush1.msra.mxu0 %v444
      %801 = vmatprep.subr.mxu0 %v457
      %802 = vmatpush1.msra.mxu0 %v456
      %803 = vmatprep.subr.mxu0 %v469
      %804 = vmatpush1.msra.mxu0 %v468
      %805 = vmatprep.subr.mxu0 %v481
      %806 = vmatpush1.msra.mxu0 %v480
      %807 = vmatprep.subr.mxu0 %v493
      %808 = vmatpush1.msra.mxu0 %v492
      %809 = vmatprep.subr.mxu0 %v505
      %810 = vmatpush1.msra.mxu0 %v504
      %811 = vmatprep.subr.mxu0 %v517
      %812 = vmatpush1.msra.mxu0 %v516
      %813 = vmatprep.subr.mxu0 %v529
      %814 = vmatpush1.msra.mxu0 %v528
      %815 = vmatprep.subr.mxu0 %v541
      %816 = vmatpush1.msra.mxu0 %v540
      %817 = vmatprep.subr.mxu0 %v553
      %818 = vmatpush1.msra.mxu0 %v552
      %819 = vmatprep.subr.mxu0 %v565
      %820 = vmatpush1.msra.mxu0 %v564
      %821 = vmatprep.subr.mxu0 %v577
      %822 = vmatpush1.msra.mxu0 %v576
      %823 = vmatprep.subr.mxu0 %v589
      %824 = vmatpush1.msra.mxu0 %v588
      %825 = vmatprep.subr.mxu0 %v601
      %826 = vmatpush1.msra.mxu0 %v600
      %827 = vmatprep.subr.mxu0 %v613
      %828 = vmatpush1.msra.mxu0 %v612
      %829 = vmatprep.subr.mxu0 %v625
      %830 = vmatpush1.msra.mxu0 %v624
      %831 = vmatprep.subr.mxu0 %v637
      %832 = vmatpush1.msra.mxu0 %v636
      %833 = vmatprep.subr.mxu0 %v682
      %834 = vmatpush1.msra.mxu0 %v679
      %835 = vmatprep.subr.mxu0 0.0
      %836 = vmatpush1.msra.mxu0 0.0
      %837 = vmatprep.subr.mxu0 0.0
      %838 = vmatpush1.msra.mxu0 0.0
      %839 = vmatprep.subr.mxu0 0.0
      %840 = vmatpush1.msra.mxu0 0.0
      %841 = vmatprep.subr.mxu0 0.0
      %842 = vmatpush1.msra.mxu0 0.0
      %843 = vmatprep.mubr.f32.mxu0 %v669
      %844 = vmatmul.mubr.f32.gmra.mrb[0].mxu0 %v662
      %v845 = vpop.f32.mrb[0].mxu0
      %v846 = vadd.f32 0.0, %v845
      %v847 = vpop.f32.mrb[0].mxu0
      %v848 = vadd.f32 0.0, %v847
      %849 = vdwg.mxu0
      %850 = vmatprep.subr.mxu0 %v327
      %851 = vmatpush1.msra.mxu0 %v326
      %852 = vmatprep.subr.mxu0 %v339
      %853 = vmatpush1.msra.mxu0 %v338
      %854 = vmatprep.subr.mxu0 %v351
      %855 = vmatpush1.msra.mxu0 %v350
      %856 = vmatprep.subr.mxu0 %v363
      %857 = vmatpush1.msra.mxu0 %v362
      %858 = vmatprep.subr.mxu0 %v375
      %859 = vmatpush1.msra.mxu0 %v374
      %860 = vmatprep.subr.mxu0 %v387
      %861 = vmatpush1.msra.mxu0 %v386
      %862 = vmatprep.subr.mxu0 %v399
      %863 = vmatpush1.msra.mxu0 %v398
      %864 = vmatprep.subr.mxu0 %v411
      %865 = vmatpush1.msra.mxu0 %v410
      %866 = vmatprep.subr.mxu0 %v423
      %867 = vmatpush1.msra.mxu0 %v422
      %868 = vmatprep.subr.mxu0 %v435
      %869 = vmatpush1.msra.mxu0 %v434
      %870 = vmatprep.subr.mxu0 %v447
      %871 = vmatpush1.msra.mxu0 %v446
      %872 = vmatprep.subr.mxu0 %v459
      %873 = vmatpush1.msra.mxu0 %v458
      %874 = vmatprep.subr.mxu0 %v471
      %875 = vmatpush1.msra.mxu0 %v470
      %876 = vmatprep.subr.mxu0 %v483
      %877 = vmatpush1.msra.mxu0 %v482
      %878 = vmatprep.subr.mxu0 %v495
      %879 = vmatpush1.msra.mxu0 %v494
      %880 = vmatprep.subr.mxu0 %v507
      %881 = vmatpush1.msra.mxu0 %v506
      %882 = vmatprep.subr.mxu0 %v519
      %883 = vmatpush1.msra.mxu0 %v518
      %884 = vmatprep.subr.mxu0 %v531
      %885 = vmatpush1.msra.mxu0 %v530
      %886 = vmatprep.subr.mxu0 %v543
      %887 = vmatpush1.msra.mxu0 %v542
      %888 = vmatprep.subr.mxu0 %v555
      %889 = vmatpush1.msra.mxu0 %v554
      %890 = vmatprep.subr.mxu0 %v567
      %891 = vmatpush1.msra.mxu0 %v566
      %892 = vmatprep.subr.mxu0 %v579
      %893 = vmatpush1.msra.mxu0 %v578
      %894 = vmatprep.subr.mxu0 %v591
      %895 = vmatpush1.msra.mxu0 %v590
      %896 = vmatprep.subr.mxu0 %v603
      %897 = vmatpush1.msra.mxu0 %v602
      %898 = vmatprep.subr.mxu0 %v615
      %899 = vmatpush1.msra.mxu0 %v614
      %900 = vmatprep.subr.mxu0 %v627
      %901 = vmatpush1.msra.mxu0 %v626
      %902 = vmatprep.subr.mxu0 %v639
      %903 = vmatpush1.msra.mxu0 %v638
      %904 = vmatprep.subr.mxu0 %v688
      %905 = vmatpush1.msra.mxu0 %v685
      %906 = vmatprep.subr.mxu0 0.0
      %907 = vmatpush1.msra.mxu0 0.0
      %908 = vmatprep.subr.mxu0 0.0
      %909 = vmatpush1.msra.mxu0 0.0
      %910 = vmatprep.subr.mxu0 0.0
      %911 = vmatpush1.msra.mxu0 0.0
      %912 = vmatprep.subr.mxu0 0.0
      %913 = vmatpush1.msra.mxu0 0.0
      %914 = vmatprep.mubr.f32.mxu0 %v669
      %915 = vmatmul.mubr.f32.gmra.mrb[0].mxu0 %v662
      %v916 = vpop.f32.mrb[0].mxu0
      %v917 = vadd.f32 0.0, %v916
      %v918 = vpop.f32.mrb[0].mxu0
      %v919 = vadd.f32 0.0, %v918
      %920 = vdwg.mxu0
      %921 = vmatprep.subr.mxu0 %v329
      %922 = vmatpush1.msra.mxu0 %v328
      %923 = vmatprep.subr.mxu0 %v341
      %924 = vmatpush1.msra.mxu0 %v340
      %925 = vmatprep.subr.mxu0 %v353
      %926 = vmatpush1.msra.mxu0 %v352
      %927 = vmatprep.subr.mxu0 %v365
      %928 = vmatpush1.msra.mxu0 %v364
      %929 = vmatprep.subr.mxu0 %v377
      %930 = vmatpush1.msra.mxu0 %v376
      %931 = vmatprep.subr.mxu0 %v389
      %932 = vmatpush1.msra.mxu0 %v388
      %933 = vmatprep.subr.mxu0 %v401
      %934 = vmatpush1.msra.mxu0 %v400
      %935 = vmatprep.subr.mxu0 %v413
      %936 = vmatpush1.msra.mxu0 %v412
      %937 = vmatprep.subr.mxu0 %v425
      %938 = vmatpush1.msra.mxu0 %v424
      %939 = vmatprep.subr.mxu0 %v437
      %940 = vmatpush1.msra.mxu0 %v436
      %941 = vmatprep.subr.mxu0 %v449
      %942 = vmatpush1.msra.mxu0 %v448
      %943 = vmatprep.subr.mxu0 %v461
      %944 = vmatpush1.msra.mxu0 %v460
      %945 = vmatprep.subr.mxu0 %v473
      %946 = vmatpush1.msra.mxu0 %v472
      %947 = vmatprep.subr.mxu0 %v485
      %948 = vmatpush1.msra.mxu0 %v484
      %949 = vmatprep.subr.mxu0 %v497
      %950 = vmatpush1.msra.mxu0 %v496
      %951 = vmatprep.subr.mxu0 %v509
      %952 = vmatpush1.msra.mxu0 %v508
      %953 = vmatprep.subr.mxu0 %v521
      %954 = vmatpush1.msra.mxu0 %v520
      %955 = vmatprep.subr.mxu0 %v533
      %956 = vmatpush1.msra.mxu0 %v532
      %957 = vmatprep.subr.mxu0 %v545
      %958 = vmatpush1.msra.mxu0 %v544
      %959 = vmatprep.subr.mxu0 %v557
      %960 = vmatpush1.msra.mxu0 %v556
      %961 = vmatprep.subr.mxu0 %v569
      %962 = vmatpush1.msra.mxu0 %v568
      %963 = vmatprep.subr.mxu0 %v581
      %964 = vmatpush1.msra.mxu0 %v580
      %965 = vmatprep.subr.mxu0 %v593
      %966 = vmatpush1.msra.mxu0 %v592
      %967 = vmatprep.subr.mxu0 %v605
      %968 = vmatpush1.msra.mxu0 %v604
      %969 = vmatprep.subr.mxu0 %v617
      %970 = vmatpush1.msra.mxu0 %v616
      %971 = vmatprep.subr.mxu0 %v629
      %972 = vmatpush1.msra.mxu0 %v628
      %973 = vmatprep.subr.mxu0 %v641
      %974 = vmatpush1.msra.mxu0 %v640
      %975 = vmatprep.subr.mxu0 %v694
      %976 = vmatpush1.msra.mxu0 %v691
      %977 = vmatprep.subr.mxu0 0.0
      %978 = vmatpush1.msra.mxu0 0.0
      %979 = vmatprep.subr.mxu0 0.0
      %980 = vmatpush1.msra.mxu0 0.0
      %981 = vmatprep.subr.mxu0 0.0
      %982 = vmatpush1.msra.mxu0 0.0
      %983 = vmatprep.subr.mxu0 0.0
      %984 = vmatpush1.msra.mxu0 0.0
      %985 = vmatprep.mubr.f32.mxu0 %v669
      %986 = vmatmul.mubr.f32.gmra.mrb[0].mxu0 %v662
      %v987 = vpop.f32.mrb[0].mxu0
      %v988 = vadd.f32 0.0, %v987
      %v989 = vpop.f32.mrb[0].mxu0
      %v990 = vadd.f32 0.0, %v989
      %991 = vdwg.mxu0
      %992 = vmatprep.subr.mxu0 %v331
      %993 = vmatpush1.msra.mxu0 %v330
      %994 = vmatprep.subr.mxu0 %v343
      %995 = vmatpush1.msra.mxu0 %v342
      %996 = vmatprep.subr.mxu0 %v355
      %997 = vmatpush1.msra.mxu0 %v354
      %998 = vmatprep.subr.mxu0 %v367
      %999 = vmatpush1.msra.mxu0 %v366
      %1000 = vmatprep.subr.mxu0 %v379
      %1001 = vmatpush1.msra.mxu0 %v378
      %1002 = vmatprep.subr.mxu0 %v391
      %1003 = vmatpush1.msra.mxu0 %v390
      %1004 = vmatprep.subr.mxu0 %v403
      %1005 = vmatpush1.msra.mxu0 %v402
      %1006 = vmatprep.subr.mxu0 %v415
      %1007 = vmatpush1.msra.mxu0 %v414
      %1008 = vmatprep.subr.mxu0 %v427
      %1009 = vmatpush1.msra.mxu0 %v426
      %1010 = vmatprep.subr.mxu0 %v439
      %1011 = vmatpush1.msra.mxu0 %v438
      %1012 = vmatprep.subr.mxu0 %v451
      %1013 = vmatpush1.msra.mxu0 %v450
      %1014 = vmatprep.subr.mxu0 %v463
      %1015 = vmatpush1.msra.mxu0 %v462
      %1016 = vmatprep.subr.mxu0 %v475
      %1017 = vmatpush1.msra.mxu0 %v474
      %1018 = vmatprep.subr.mxu0 %v487
      %1019 = vmatpush1.msra.mxu0 %v486
      %1020 = vmatprep.subr.mxu0 %v499
      %1021 = vmatpush1.msra.mxu0 %v498
      %1022 = vmatprep.subr.mxu0 %v511
      %1023 = vmatpush1.msra.mxu0 %v510
      %1024 = vmatprep.subr.mxu0 %v523
      %1025 = vmatpush1.msra.mxu0 %v522
      %1026 = vmatprep.subr.mxu0 %v535
      %1027 = vmatpush1.msra.mxu0 %v534
      %1028 = vmatprep.subr.mxu0 %v547
      %1029 = vmatpush1.msra.mxu0 %v546
      %1030 = vmatprep.subr.mxu0 %v559
      %1031 = vmatpush1.msra.mxu0 %v558
      %1032 = vmatprep.subr.mxu0 %v571
      %1033 = vmatpush1.msra.mxu0 %v570
      %1034 = vmatprep.subr.mxu0 %v583
      %1035 = vmatpush1.msra.mxu0 %v582
      %1036 = vmatprep.subr.mxu0 %v595
      %1037 = vmatpush1.msra.mxu0 %v594
      %1038 = vmatprep.subr.mxu0 %v607
      %1039 = vmatpush1.msra.mxu0 %v606
      %1040 = vmatprep.subr.mxu0 %v619
      %1041 = vmatpush1.msra.mxu0 %v618
      %1042 = vmatprep.subr.mxu0 %v631
      %1043 = vmatpush1.msra.mxu0 %v630
      %1044 = vmatprep.subr.mxu0 %v643
      %1045 = vmatpush1.msra.mxu0 %v642
      %1046 = vmatprep.subr.mxu0 %v700
      %1047 = vmatpush1.msra.mxu0 %v697
      %1048 = vmatprep.subr.mxu0 0.0
      %1049 = vmatpush1.msra.mxu0 0.0
      %1050 = vmatprep.subr.mxu0 0.0
      %1051 = vmatpush1.msra.mxu0 0.0
      %1052 = vmatprep.subr.mxu0 0.0
      %1053 = vmatpush1.msra.mxu0 0.0
      %1054 = vmatprep.subr.mxu0 0.0
      %1055 = vmatpush1.msra.mxu0 0.0
      %1056 = vmatprep.mubr.f32.mxu0 %v669
      %1057 = vmatmul.mubr.f32.gmra.mrb[0].mxu0 %v662
      %v1058 = vpop.f32.mrb[0].mxu0
      %v1059 = vadd.f32 0.0, %v1058
      %v1060 = vpop.f32.mrb[0].mxu0
      %v1061 = vadd.f32 0.0, %v1060
      %1062 = vdwg.mxu0
      %1063 = vmatprep.subr.mxu0 %v333
      %1064 = vmatpush1.msra.mxu0 %v332
      %1065 = vmatprep.subr.mxu0 %v345
      %1066 = vmatpush1.msra.mxu0 %v344
      %1067 = vmatprep.subr.mxu0 %v357
      %1068 = vmatpush1.msra.mxu0 %v356
      %1069 = vmatprep.subr.mxu0 %v369
      %1070 = vmatpush1.msra.mxu0 %v368
      %1071 = vmatprep.subr.mxu0 %v381
      %1072 = vmatpush1.msra.mxu0 %v380
      %1073 = vmatprep.subr.mxu0 %v393
      %1074 = vmatpush1.msra.mxu0 %v392
      %1075 = vmatprep.subr.mxu0 %v405
      %1076 = vmatpush1.msra.mxu0 %v404
      %1077 = vmatprep.subr.mxu0 %v417
      %1078 = vmatpush1.msra.mxu0 %v416
      %1079 = vmatprep.subr.mxu0 %v429
      %1080 = vmatpush1.msra.mxu0 %v428
      %1081 = vmatprep.subr.mxu0 %v441
      %1082 = vmatpush1.msra.mxu0 %v440
      %1083 = vmatprep.subr.mxu0 %v453
      %1084 = vmatpush1.msra.mxu0 %v452
      %1085 = vmatprep.subr.mxu0 %v465
      %1086 = vmatpush1.msra.mxu0 %v464
      %1087 = vmatprep.subr.mxu0 %v477
      %1088 = vmatpush1.msra.mxu0 %v476
      %1089 = vmatprep.subr.mxu0 %v489
      %1090 = vmatpush1.msra.mxu0 %v488
      %1091 = vmatprep.subr.mxu0 %v501
      %1092 = vmatpush1.msra.mxu0 %v500
      %1093 = vmatprep.subr.mxu0 %v513
      %1094 = vmatpush1.msra.mxu0 %v512
      %1095 = vmatprep.subr.mxu0 %v525
      %1096 = vmatpush1.msra.mxu0 %v524
      %1097 = vmatprep.subr.mxu0 %v537
      %1098 = vmatpush1.msra.mxu0 %v536
      %1099 = vmatprep.subr.mxu0 %v549
      %1100 = vmatpush1.msra.mxu0 %v548
      %1101 = vmatprep.subr.mxu0 %v561
      %1102 = vmatpush1.msra.mxu0 %v560
      %1103 = vmatprep.subr.mxu0 %v573
      %1104 = vmatpush1.msra.mxu0 %v572
      %1105 = vmatprep.subr.mxu0 %v585
      %1106 = vmatpush1.msra.mxu0 %v584
      %1107 = vmatprep.subr.mxu0 %v597
      %1108 = vmatpush1.msra.mxu0 %v596
      %1109 = vmatprep.subr.mxu0 %v609
      %1110 = vmatpush1.msra.mxu0 %v608
      %1111 = vmatprep.subr.mxu0 %v621
      %1112 = vmatpush1.msra.mxu0 %v620
      %1113 = vmatprep.subr.mxu0 %v633
      %1114 = vmatpush1.msra.mxu0 %v632
      %1115 = vmatprep.subr.mxu0 %v645
      %1116 = vmatpush1.msra.mxu0 %v644
      %1117 = vmatprep.subr.mxu0 %v706
      %1118 = vmatpush1.msra.mxu0 %v703
      %1119 = vmatprep.subr.mxu0 0.0
      %1120 = vmatpush1.msra.mxu0 0.0
      %1121 = vmatprep.subr.mxu0 0.0
      %1122 = vmatpush1.msra.mxu0 0.0
      %1123 = vmatprep.subr.mxu0 0.0
      %1124 = vmatpush1.msra.mxu0 0.0
      %1125 = vmatprep.subr.mxu0 0.0
      %1126 = vmatpush1.msra.mxu0 0.0
      %1127 = vmatprep.mubr.f32.mxu0 %v669
      %1128 = vmatmul.mubr.f32.gmra.mrb[0].mxu0 %v662
      %v1129 = vpop.f32.mrb[0].mxu0
      %v1130 = vadd.f32 0.0, %v1129
      %v1131 = vpop.f32.mrb[0].mxu0
      %v1132 = vadd.f32 0.0, %v1131
      %1133 = vdwg.mxu0
      %v1134 = vld [vmem:[%s308] sm:$0xff]
      %v1135 = vld [vmem:[%s308 + $0x8] sm:$0xf]
      %v1136 = vld [vmem:[%s2] sm:$0xff]
      %v1137 = vld [vmem:[%s2 + $0x8] sm:$0xff]
      %v1138 = vld [vmem:[%s2 + $0x10] sm:$0xff]
      %v1139 = vld [vmem:[%s2 + $0x18] sm:$0xff]
      %v1140 = vld [vmem:[%s2 + $0x20] sm:$0xff]
      %v1141 = vld [vmem:[%s2 + $0x28] sm:$0xff]
      %v1142 = vld [vmem:[%s2 + $0x30] sm:$0xff]
      %v1143 = vld [vmem:[%s2 + $0x38] sm:$0xff]
      %v1144 = vld [vmem:[%s2 + $0x40] sm:$0xff]
      %v1145 = vld [vmem:[%s2 + $0x48] sm:$0xff]
      %v1146 = vld [vmem:[%s2 + $0x50] sm:$0xff]
      %v1147 = vld [vmem:[%s2 + $0x58] sm:$0xff]
      %vm1148 = vcmask 195584
      %v1150 = vsel %vm1148, %v1134, 0
      %v1153 = vsel %vm1148, %v1135, 0
      %1155 = vmatprep.subr.mxu0 %v1137
      %1156 = vmatpush1.msra.mxu0 %v1136
      %1157 = vmatprep.subr.mxu0 %v1141
      %1158 = vmatpush1.msra.mxu0 %v1140
      %1159 = vmatprep.subr.mxu0 %v1145
      %1160 = vmatpush1.msra.mxu0 %v1144
      %1161 = vmatprep.subr.mxu0 0.0
      %1162 = vmatpush1.msra.mxu0 0.0
      %1163 = vmatprep.subr.mxu0 0.0
      %1164 = vmatpush1.msra.mxu0 0.0
      %1165 = vmatprep.subr.mxu0 0.0
      %1166 = vmatpush1.msra.mxu0 0.0
      %1167 = vmatprep.subr.mxu0 0.0
      %1168 = vmatpush1.msra.mxu0 0.0
      %1169 = vmatprep.subr.mxu0 0.0
      %1170 = vmatpush1.msra.mxu0 0.0
      %1171 = vmatprep.subr.mxu0 0.0
      %1172 = vmatpush1.msra.mxu0 0.0
      %1173 = vmatprep.subr.mxu0 0.0
      %1174 = vmatpush1.msra.mxu0 0.0
      %1175 = vmatprep.subr.mxu0 0.0
      %1176 = vmatpush1.msra.mxu0 0.0
      %1177 = vmatprep.subr.mxu0 0.0
      %1178 = vmatpush1.msra.mxu0 0.0
      %1179 = vmatprep.subr.mxu0 0.0
      %1180 = vmatpush1.msra.mxu0 0.0
      %1181 = vmatprep.subr.mxu0 0.0
      %1182 = vmatpush1.msra.mxu0 0.0
      %1183 = vmatprep.subr.mxu0 0.0
      %1184 = vmatpush1.msra.mxu0 0.0
      %1185 = vmatprep.subr.mxu0 0.0
      %1186 = vmatpush1.msra.mxu0 0.0
      %1187 = vmatprep.subr.mxu0 0.0
      %1188 = vmatpush1.msra.mxu0 0.0
      %1189 = vmatprep.subr.mxu0 0.0
      %1190 = vmatpush1.msra.mxu0 0.0
      %1191 = vmatprep.subr.mxu0 0.0
      %1192 = vmatpush1.msra.mxu0 0.0
      %1193 = vmatprep.subr.mxu0 0.0
      %1194 = vmatpush1.msra.mxu0 0.0
      %1195 = vmatprep.subr.mxu0 0.0
      %1196 = vmatpush1.msra.mxu0 0.0
      %1197 = vmatprep.subr.mxu0 0.0
      %1198 = vmatpush1.msra.mxu0 0.0
      %1199 = vmatprep.subr.mxu0 0.0
      %1200 = vmatpush1.msra.mxu0 0.0
      %1201 = vmatprep.subr.mxu0 0.0
      %1202 = vmatpush1.msra.mxu0 0.0
      %1203 = vmatprep.subr.mxu0 0.0
      %1204 = vmatpush1.msra.mxu0 0.0
      %1205 = vmatprep.subr.mxu0 0.0
      %1206 = vmatpush1.msra.mxu0 0.0
      %1207 = vmatprep.subr.mxu0 0.0
      %1208 = vmatpush1.msra.mxu0 0.0
      %1209 = vmatprep.subr.mxu0 0.0
      %1210 = vmatpush1.msra.mxu0 0.0
      %1211 = vmatprep.subr.mxu0 0.0
      %1212 = vmatpush1.msra.mxu0 0.0
      %1213 = vmatprep.subr.mxu0 0.0
      %1214 = vmatpush1.msra.mxu0 0.0
      %1215 = vmatprep.subr.mxu0 0.0
      %1216 = vmatpush1.msra.mxu0 0.0
      %1217 = vmatprep.subr.mxu0 0.0
      %1218 = vmatpush1.msra.mxu0 0.0
      %1219 = vmatprep.mubr.f32.mxu0 0.0
      %1220 = vmatmul.mubr.f32.gmra.mrb[0].mxu0 %v1150
      %v1221 = vpop.f32.mrb[0].mxu0
      %v1222 = vadd.f32 0.0, %v1221
      %v1223 = vpop.f32.mrb[0].mxu0
      %v1224 = vadd.f32 0.0, %v1223
      %1225 = vmatprep.mubr.f32.mxu0 0.0
      %1226 = vmatmul.mubr.f32.gmra.mrb[0].mxu0 %v1153
      %v1227 = vpop.f32.mrb[0].mxu0
      %v1228 = vadd.f32 0.0, %v1227
      %v1229 = vpop.f32.mrb[0].mxu0
      %v1230 = vadd.f32 0.0, %v1229
      %1231 = vdwg.mxu0
      %1232 = vmatprep.subr.mxu0 %v1139
      %1233 = vmatpush1.msra.mxu0 %v1138
      %1234 = vmatprep.subr.mxu0 %v1143
      %1235 = vmatpush1.msra.mxu0 %v1142
      %1236 = vmatprep.subr.mxu0 %v1147
      %1237 = vmatpush1.msra.mxu0 %v1146
      %1238 = vmatprep.subr.mxu0 0.0
      %1239 = vmatpush1.msra.mxu0 0.0
      %1240 = vmatprep.subr.mxu0 0.0
      %1241 = vmatpush1.msra.mxu0 0.0
      %1242 = vmatprep.subr.mxu0 0.0
      %1243 = vmatpush1.msra.mxu0 0.0
      %1244 = vmatprep.subr.mxu0 0.0
      %1245 = vmatpush1.msra.mxu0 0.0
      %1246 = vmatprep.subr.mxu0 0.0
      %1247 = vmatpush1.msra.mxu0 0.0
      %1248 = vmatprep.subr.mxu0 0.0
      %1249 = vmatpush1.msra.mxu0 0.0
      %1250 = vmatprep.subr.mxu0 0.0
      %1251 = vmatpush1.msra.mxu0 0.0
      %1252 = vmatprep.subr.mxu0 0.0
      %1253 = vmatpush1.msra.mxu0 0.0
      %1254 = vmatprep.subr.mxu0 0.0
      %1255 = vmatpush1.msra.mxu0 0.0
      %1256 = vmatprep.subr.mxu0 0.0
      %1257 = vmatpush1.msra.mxu0 0.0
      %1258 = vmatprep.subr.mxu0 0.0
      %1259 = vmatpush1.msra.mxu0 0.0
      %1260 = vmatprep.subr.mxu0 0.0
      %1261 = vmatpush1.msra.mxu0 0.0
      %1262 = vmatprep.subr.mxu0 0.0
      %1263 = vmatpush1.msra.mxu0 0.0
      %1264 = vmatprep.subr.mxu0 0.0
      %1265 = vmatpush1.msra.mxu0 0.0
      %1266 = vmatprep.subr.mxu0 0.0
      %1267 = vmatpush1.msra.mxu0 0.0
      %1268 = vmatprep.subr.mxu0 0.0
      %1269 = vmatpush1.msra.mxu0 0.0
      %1270 = vmatprep.subr.mxu0 0.0
      %1271 = vmatpush1.msra.mxu0 0.0
      %1272 = vmatprep.subr.mxu0 0.0
      %1273 = vmatpush1.msra.mxu0 0.0
      %1274 = vmatprep.subr.mxu0 0.0
      %1275 = vmatpush1.msra.mxu0 0.0
      %1276 = vmatprep.subr.mxu0 0.0
      %1277 = vmatpush1.msra.mxu0 0.0
      %1278 = vmatprep.subr.mxu0 0.0
      %1279 = vmatpush1.msra.mxu0 0.0
      %1280 = vmatprep.subr.mxu0 0.0
      %1281 = vmatpush1.msra.mxu0 0.0
      %1282 = vmatprep.subr.mxu0 0.0
      %1283 = vmatpush1.msra.mxu0 0.0
      %1284 = vmatprep.subr.mxu0 0.0
      %1285 = vmatpush1.msra.mxu0 0.0
      %1286 = vmatprep.subr.mxu0 0.0
      %1287 = vmatpush1.msra.mxu0 0.0
      %1288 = vmatprep.subr.mxu0 0.0
      %1289 = vmatpush1.msra.mxu0 0.0
      %1290 = vmatprep.subr.mxu0 0.0
      %1291 = vmatpush1.msra.mxu0 0.0
      %1292 = vmatprep.subr.mxu0 0.0
      %1293 = vmatpush1.msra.mxu0 0.0
      %1294 = vmatprep.subr.mxu0 0.0
      %1295 = vmatpush1.msra.mxu0 0.0
      %1296 = vmatprep.mubr.f32.mxu0 0.0
      %1297 = vmatmul.mubr.f32.gmra.mrb[0].mxu0 %v1150
      %v1298 = vpop.f32.mrb[0].mxu0
      %v1299 = vadd.f32 0.0, %v1298
      %v1300 = vpop.f32.mrb[0].mxu0
      %v1301 = vadd.f32 0.0, %v1300
      %1302 = vmatprep.mubr.f32.mxu0 0.0
      %1303 = vmatmul.mubr.f32.gmra.mrb[0].mxu0 %v1153
      %v1304 = vpop.f32.mrb[0].mxu0
      %v1305 = vadd.f32 0.0, %v1304
      %v1306 = vpop.f32.mrb[0].mxu0
      %v1307 = vadd.f32 0.0, %v1306
      %1308 = vdwg.mxu0
      %v1309 = vmul.f32 %v1222, %v775
      %v1310 = vmul.f32 %v1224, %v777
      %v1311 = vmul.f32 %v1299, %v846
      %v1312 = vmul.f32 %v1301, %v848
      %v1317 = vrot.slane %v917, 7
      %v1318 = vrot.slane %v919, 7
      %v1319 = vrot.slane %v988, 7
      %v1320 = vrot.slane %v990, 7
      %v1325 = vmul.f32 %v1222, %v1317
      %v1326 = vmul.f32 %v1224, %v1318
      %v1327 = vmul.f32 %v1299, %v1319
      %v1328 = vmul.f32 %v1301, %v1320
      %v1333 = vrot.slane %v1325, 1
      %v1334 = vrot.slane %v1326, 1
      %v1335 = vrot.slane %v1327, 1
      %v1336 = vrot.slane %v1328, 1
      %v1341 = vadd.f32 %v1309, %v1333
      %v1342 = vadd.f32 %v1310, %v1334
      %v1343 = vadd.f32 %v1311, %v1335
      %v1344 = vadd.f32 %v1312, %v1336
      %v1349 = vrot.slane %v1059, 6
      %v1350 = vrot.slane %v1061, 6
      %v1351 = vrot.slane %v1130, 6
      %v1352 = vrot.slane %v1132, 6
      %v1357 = vmul.f32 %v1222, %v1349
      %v1358 = vmul.f32 %v1224, %v1350
      %v1359 = vmul.f32 %v1299, %v1351
      %v1360 = vmul.f32 %v1301, %v1352
      %v1365 = vrot.slane %v1357, 2
      %v1366 = vrot.slane %v1358, 2
      %v1367 = vrot.slane %v1359, 2
      %v1368 = vrot.slane %v1360, 2
      %v1373 = vadd.f32 %v1341, %v1365
      %v1374 = vadd.f32 %v1342, %v1366
      %v1375 = vadd.f32 %v1343, %v1367
      %v1376 = vadd.f32 %v1344, %v1368
      %v1381 = vrot.slane %v1222, 3
      %v1382 = vrot.slane %v1224, 3
      %v1383 = vrot.slane %v1299, 3
      %v1384 = vrot.slane %v1301, 3
      %v1389 = vadd.f32 %v1373, %v1381
      %v1390 = vadd.f32 %v1374, %v1382
      %v1391 = vadd.f32 %v1375, %v1383
      %v1392 = vadd.f32 %v1376, %v1384
      %v1397 = vrot.slane %v775, 4
      %v1398 = vrot.slane %v777, 4
      %v1399 = vrot.slane %v846, 4
      %v1400 = vrot.slane %v848, 4
      %v1405 = vmul.f32 %v1222, %v1397
      %v1406 = vmul.f32 %v1224, %v1398
      %v1407 = vmul.f32 %v1299, %v1399
      %v1408 = vmul.f32 %v1301, %v1400
      %v1409 = vrot.slane %v917, 3
      %v1410 = vrot.slane %v919, 3
      %v1411 = vrot.slane %v988, 3
      %v1412 = vrot.slane %v990, 3
      %v1417 = vmul.f32 %v1222, %v1409
      %v1418 = vmul.f32 %v1224, %v1410
      %v1419 = vmul.f32 %v1299, %v1411
      %v1420 = vmul.f32 %v1301, %v1412
      %v1425 = vrot.slane %v1417, 1
      %v1426 = vrot.slane %v1418, 1
      %v1427 = vrot.slane %v1419, 1
      %v1428 = vrot.slane %v1420, 1
      %v1433 = vadd.f32 %v1405, %v1425
      %v1434 = vadd.f32 %v1406, %v1426
      %v1435 = vadd.f32 %v1407, %v1427
      %v1436 = vadd.f32 %v1408, %v1428
      %v1437 = vrot.slane %v1059, 2
      %v1438 = vrot.slane %v1061, 2
      %v1439 = vrot.slane %v1130, 2
      %v1440 = vrot.slane %v1132, 2
      %v1445 = vmul.f32 %v1222, %v1437
      %v1446 = vmul.f32 %v1224, %v1438
      %v1447 = vmul.f32 %v1299, %v1439
      %v1448 = vmul.f32 %v1301, %v1440
      %v1453 = vrot.slane %v1445, 2
      %v1454 = vrot.slane %v1446, 2
      %v1455 = vrot.slane %v1447, 2
      %v1456 = vrot.slane %v1448, 2
      %v1461 = vadd.f32 %v1433, %v1453
      %v1462 = vadd.f32 %v1434, %v1454
      %v1463 = vadd.f32 %v1435, %v1455
      %v1464 = vadd.f32 %v1436, %v1456
      %v1465 = vadd.f32 %v1461, %v1381
      %v1466 = vadd.f32 %v1462, %v1382
      %v1467 = vadd.f32 %v1463, %v1383
      %v1468 = vadd.f32 %v1464, %v1384
      %v1469 = vmul.f32 %v1228, %v775
      %v1470 = vmul.f32 %v1230, %v777
      %v1471 = vmul.f32 %v1305, %v846
      %v1472 = vmul.f32 %v1307, %v848
      %v1473 = vmul.f32 %v1228, %v1317
      %v1474 = vmul.f32 %v1230, %v1318
      %v1475 = vmul.f32 %v1305, %v1319
      %v1476 = vmul.f32 %v1307, %v1320
      %v1481 = vrot.slane %v1473, 1
      %v1482 = vrot.slane %v1474, 1
      %v1483 = vrot.slane %v1475, 1
      %v1484 = vrot.slane %v1476, 1
      %v1489 = vadd.f32 %v1469, %v1481
      %v1490 = vadd.f32 %v1470, %v1482
      %v1491 = vadd.f32 %v1471, %v1483
      %v1492 = vadd.f32 %v1472, %v1484
      %v1493 = vmul.f32 %v1228, %v1349
      %v1494 = vmul.f32 %v1230, %v1350
      %v1495 = vmul.f32 %v1305, %v1351
      %v1496 = vmul.f32 %v1307, %v1352
      %v1501 = vrot.slane %v1493, 2
      %v1502 = vrot.slane %v1494, 2
      %v1503 = vrot.slane %v1495, 2
      %v1504 = vrot.slane %v1496, 2
      %v1509 = vadd.f32 %v1489, %v1501
      %v1510 = vadd.f32 %v1490, %v1502
      %v1511 = vadd.f32 %v1491, %v1503
      %v1512 = vadd.f32 %v1492, %v1504
      %v1517 = vrot.slane %v1228, 3
      %v1518 = vrot.slane %v1230, 3
      %v1519 = vrot.slane %v1305, 3
      %v1520 = vrot.slane %v1307, 3
      %v1525 = vadd.f32 %v1509, %v1517
      %v1526 = vadd.f32 %v1510, %v1518
      %v1527 = vadd.f32 %v1511, %v1519
      %v1528 = vadd.f32 %v1512, %v1520
      %v1533 = vrot.slane %v1465, 3
      %v1534 = vrot.slane %v1466, 3
      %v1535 = vrot.slane %v1467, 3
      %v1536 = vrot.slane %v1468, 3
      %v1545 = vrot.slane %v1525, 6
      %v1546 = vrot.slane %v1526, 6
      %v1547 = vrot.slane %v1527, 6
      %v1548 = vrot.slane %v1528, 6
      %vm1553 = vcmask 1040384
      %v1554 = vsel %vm1553, %v1389, %v1533
      %v1555 = vsel %vm1553, %v1390, %v1534
      %v1556 = vsel %vm1553, %v1391, %v1535
      %v1557 = vsel %vm1553, %v1392, %v1536
      %v1558 = vsel %vm671, %v1554, %v1545
      %v1559 = vsel %vm671, %v1555, %v1546
      %v1560 = vsel %vm671, %v1556, %v1547
      %v1561 = vsel %vm671, %v1557, %v1548
      %v1562 = vld [vmem:[%s4] sm:$0xff]
      %v1563 = vld [vmem:[%s4 + $0x8] sm:$0xff]
      %v1564 = vld [vmem:[%s4 + $0x10] sm:$0xff]
      %v1565 = vld [vmem:[%s4 + $0x18] sm:$0xff]
      %v1566 = vld [vmem:[%s4 + $0x20] sm:$0xff]
      %v1567 = vld [vmem:[%s4 + $0x28] sm:$0xff]
      %v1568 = vld [vmem:[%s4 + $0x30] sm:$0xff]
      %v1569 = vld [vmem:[%s4 + $0x38] sm:$0xff]
      %v1570 = vld [vmem:[%s4 + $0x40] sm:$0xff]
      %v1571 = vld [vmem:[%s4 + $0x48] sm:$0xff]
      %v1572 = vld [vmem:[%s4 + $0x50] sm:$0xff]
      %v1573 = vld [vmem:[%s4 + $0x58] sm:$0xff]
      %v1574 = vld [vmem:[%s4 + $0x60] sm:$0xff]
      %v1575 = vld [vmem:[%s4 + $0x68] sm:$0xff]
      %v1576 = vld [vmem:[%s4 + $0x70] sm:$0xff]
      %v1577 = vld [vmem:[%s4 + $0x78] sm:$0xff]
      %v1578 = vld [vmem:[%s4 + $0x80] sm:$0xff]
      %v1579 = vld [vmem:[%s4 + $0x88] sm:$0xff]
      %v1580 = vld [vmem:[%s4 + $0x90] sm:$0xff]
      %v1581 = vld [vmem:[%s4 + $0x98] sm:$0xff]
      %v1582 = vld [vmem:[%s4 + $0xa0] sm:$0xff]
      %v1583 = vld [vmem:[%s4 + $0xa8] sm:$0xff]
      %v1584 = vld [vmem:[%s4 + $0xb0] sm:$0xff]
      %v1585 = vld [vmem:[%s4 + $0xb8] sm:$0xff]
      %v1586 = vld [vmem:[%s4 + $0xc0] sm:$0xff]
      %v1587 = vld [vmem:[%s4 + $0xc8] sm:$0xff]
      %v1588 = vld [vmem:[%s4 + $0xd0] sm:$0xff]
      %v1589 = vld [vmem:[%s4 + $0xd8] sm:$0xff]
      %v1590 = vld [vmem:[%s4 + $0xe0] sm:$0xff]
      %v1591 = vld [vmem:[%s4 + $0xe8] sm:$0xff]
      %v1592 = vld [vmem:[%s4 + $0xf0] sm:$0xff]
      %v1593 = vld [vmem:[%s4 + $0xf8] sm:$0xff]
      %v1594 = vld [vmem:[%s4 + $0x100] sm:$0xff]
      %v1595 = vld [vmem:[%s4 + $0x108] sm:$0xff]
      %v1596 = vld [vmem:[%s4 + $0x110] sm:$0xff]
      %v1597 = vld [vmem:[%s4 + $0x118] sm:$0xff]
      %v1598 = vld [vmem:[%s4 + $0x120] sm:$0xff]
      %v1599 = vld [vmem:[%s4 + $0x128] sm:$0xff]
      %v1600 = vld [vmem:[%s4 + $0x130] sm:$0xff]
      %v1601 = vld [vmem:[%s4 + $0x138] sm:$0xff]
      %v1602 = vld [vmem:[%s4 + $0x140] sm:$0xff]
      %v1603 = vld [vmem:[%s4 + $0x148] sm:$0xff]
      %v1604 = vld [vmem:[%s4 + $0x150] sm:$0xff]
      %v1605 = vld [vmem:[%s4 + $0x158] sm:$0xff]
      %v1606 = vld [vmem:[%s4 + $0x160] sm:$0xff]
      %v1607 = vld [vmem:[%s4 + $0x168] sm:$0xff]
      %v1608 = vld [vmem:[%s4 + $0x170] sm:$0xff]
      %v1609 = vld [vmem:[%s4 + $0x178] sm:$0xff]
      %v1610 = vld [vmem:[%s4 + $0x180] sm:$0xff]
      %v1611 = vld [vmem:[%s4 + $0x188] sm:$0xff]
      %v1612 = vld [vmem:[%s4 + $0x190] sm:$0xff]
      %v1613 = vld [vmem:[%s4 + $0x198] sm:$0xff]
      %v1614 = vld [vmem:[%s4 + $0x1a0] sm:$0xff]
      %v1615 = vld [vmem:[%s4 + $0x1a8] sm:$0xff]
      %v1616 = vld [vmem:[%s4 + $0x1b0] sm:$0xff]
      %v1617 = vld [vmem:[%s4 + $0x1b8] sm:$0xff]
      %v1618 = vld [vmem:[%s4 + $0x1c0] sm:$0xff]
      %v1619 = vld [vmem:[%s4 + $0x1c8] sm:$0xff]
      %v1620 = vld [vmem:[%s4 + $0x1d0] sm:$0xff]
      %v1621 = vld [vmem:[%s4 + $0x1d8] sm:$0xff]
      %v1622 = vld [vmem:[%s4 + $0x1e0] sm:$0xff]
      %v1623 = vld [vmem:[%s4 + $0x1e8] sm:$0xff]
      %v1624 = vld [vmem:[%s4 + $0x1f0] sm:$0xff]
      %v1625 = vld [vmem:[%s4 + $0x1f8] sm:$0xff]
      %1626 = vmatprep.subr.mxu0 0.0
      %1627 = vmatpush1.msra.mxu0 %v1562
      %1628 = vmatprep.subr.mxu0 0.0
      %1629 = vmatpush1.msra.mxu0 %v1563
      %1630 = vmatprep.subr.mxu0 0.0
      %1631 = vmatpush1.msra.mxu0 %v1564
      %1632 = vmatprep.subr.mxu0 0.0
      %1633 = vmatpush1.msra.mxu0 %v1565
      %1634 = vmatprep.subr.mxu0 0.0
      %1635 = vmatpush1.msra.mxu0 %v1566
      %1636 = vmatprep.subr.mxu0 0.0
      %1637 = vmatpush1.msra.mxu0 %v1567
      %1638 = vmatprep.subr.mxu0 0.0
      %1639 = vmatpush1.msra.mxu0 %v1568
      %1640 = vmatprep.subr.mxu0 0.0
      %1641 = vmatpush1.msra.mxu0 %v1569
      %1642 = vmatprep.subr.mxu0 0.0
      %1643 = vmatpush1.msra.mxu0 %v1570
      %1644 = vmatprep.subr.mxu0 0.0
      %1645 = vmatpush1.msra.mxu0 %v1571
      %1646 = vmatprep.subr.mxu0 0.0
      %1647 = vmatpush1.msra.mxu0 %v1572
      %1648 = vmatprep.subr.mxu0 0.0
      %1649 = vmatpush1.msra.mxu0 %v1573
      %1650 = vmatprep.subr.mxu0 0.0
      %1651 = vmatpush1.msra.mxu0 %v1574
      %1652 = vmatprep.subr.mxu0 0.0
      %1653 = vmatpush1.msra.mxu0 %v1575
      %1654 = vmatprep.subr.mxu0 0.0
      %1655 = vmatpush1.msra.mxu0 %v1576
      %1656 = vmatprep.subr.mxu0 0.0
      %1657 = vmatpush1.msra.mxu0 %v1577
      %1658 = vmatprep.subr.mxu0 0.0
      %1659 = vmatpush1.msra.mxu0 %v1578
      %1660 = vmatprep.subr.mxu0 0.0
      %1661 = vmatpush1.msra.mxu0 %v1579
      %1662 = vmatprep.subr.mxu0 0.0
      %1663 = vmatpush1.msra.mxu0 %v1580
      %1664 = vmatprep.subr.mxu0 0.0
      %1665 = vmatpush1.msra.mxu0 %v1581
      %1666 = vmatprep.subr.mxu0 0.0
      %1667 = vmatpush1.msra.mxu0 %v1582
      %1668 = vmatprep.subr.mxu0 0.0
      %1669 = vmatpush1.msra.mxu0 %v1583
      %1670 = vmatprep.subr.mxu0 0.0
      %1671 = vmatpush1.msra.mxu0 %v1584
      %1672 = vmatprep.subr.mxu0 0.0
      %1673 = vmatpush1.msra.mxu0 %v1585
      %1674 = vmatprep.subr.mxu0 0.0
      %1675 = vmatpush1.msra.mxu0 %v1586
      %1676 = vmatprep.subr.mxu0 0.0
      %1677 = vmatpush1.msra.mxu0 %v1587
      %1678 = vmatprep.subr.mxu0 0.0
      %1679 = vmatpush1.msra.mxu0 %v1588
      %1680 = vmatprep.subr.mxu0 0.0
      %1681 = vmatpush1.msra.mxu0 %v1589
      %1682 = vmatprep.subr.mxu0 0.0
      %1683 = vmatpush1.msra.mxu0 %v1590
      %1684 = vmatprep.subr.mxu0 0.0
      %1685 = vmatpush1.msra.mxu0 %v1591
      %1686 = vmatprep.subr.mxu0 0.0
      %1687 = vmatpush1.msra.mxu0 %v1592
      %1688 = vmatprep.subr.mxu0 0.0
      %1689 = vmatpush1.msra.mxu0 %v1593
      %1690 = vmatprep.mubr.f32.mxu0 %v1559
      %1691 = vmatmul.mubr.f32.gmra.mrb[0].mxu0 %v1558
      %v1692 = vpop.f32.mrb[0].mxu0
      %v1693 = vadd.f32 0.0, %v1692
      %v1694 = vpop.f32.mrb[0].mxu0
      %1695 = vdwg.mxu0
      %1696 = vmatprep.subr.mxu0 0.0
      %1697 = vmatpush1.msra.mxu0 %v1594
      %1698 = vmatprep.subr.mxu0 0.0
      %1699 = vmatpush1.msra.mxu0 %v1595
      %1700 = vmatprep.subr.mxu0 0.0
      %1701 = vmatpush1.msra.mxu0 %v1596
      %1702 = vmatprep.subr.mxu0 0.0
      %1703 = vmatpush1.msra.mxu0 %v1597
      %1704 = vmatprep.subr.mxu0 0.0
      %1705 = vmatpush1.msra.mxu0 %v1598
      %1706 = vmatprep.subr.mxu0 0.0
      %1707 = vmatpush1.msra.mxu0 %v1599
      %1708 = vmatprep.subr.mxu0 0.0
      %1709 = vmatpush1.msra.mxu0 %v1600
      %1710 = vmatprep.subr.mxu0 0.0
      %1711 = vmatpush1.msra.mxu0 %v1601
      %1712 = vmatprep.subr.mxu0 0.0
      %1713 = vmatpush1.msra.mxu0 %v1602
      %1714 = vmatprep.subr.mxu0 0.0
      %1715 = vmatpush1.msra.mxu0 %v1603
      %1716 = vmatprep.subr.mxu0 0.0
      %1717 = vmatpush1.msra.mxu0 %v1604
      %1718 = vmatprep.subr.mxu0 0.0
      %1719 = vmatpush1.msra.mxu0 %v1605
      %1720 = vmatprep.subr.mxu0 0.0
      %1721 = vmatpush1.msra.mxu0 %v1606
      %1722 = vmatprep.subr.mxu0 0.0
      %1723 = vmatpush1.msra.mxu0 %v1607
      %1724 = vmatprep.subr.mxu0 0.0
      %1725 = vmatpush1.msra.mxu0 %v1608
      %1726 = vmatprep.subr.mxu0 0.0
      %1727 = vmatpush1.msra.mxu0 %v1609
      %1728 = vmatprep.subr.mxu0 0.0
      %1729 = vmatpush1.msra.mxu0 %v1610
      %1730 = vmatprep.subr.mxu0 0.0
      %1731 = vmatpush1.msra.mxu0 %v1611
      %1732 = vmatprep.subr.mxu0 0.0
      %1733 = vmatpush1.msra.mxu0 %v1612
      %1734 = vmatprep.subr.mxu0 0.0
      %1735 = vmatpush1.msra.mxu0 %v1613
      %1736 = vmatprep.subr.mxu0 0.0
      %1737 = vmatpush1.msra.mxu0 %v1614
      %1738 = vmatprep.subr.mxu0 0.0
      %1739 = vmatpush1.msra.mxu0 %v1615
      %1740 = vmatprep.subr.mxu0 0.0
      %1741 = vmatpush1.msra.mxu0 %v1616
      %1742 = vmatprep.subr.mxu0 0.0
      %1743 = vmatpush1.msra.mxu0 %v1617
      %1744 = vmatprep.subr.mxu0 0.0
      %1745 = vmatpush1.msra.mxu0 %v1618
      %1746 = vmatprep.subr.mxu0 0.0
      %1747 = vmatpush1.msra.mxu0 %v1619
      %1748 = vmatprep.subr.mxu0 0.0
      %1749 = vmatpush1.msra.mxu0 %v1620
      %1750 = vmatprep.subr.mxu0 0.0
      %1751 = vmatpush1.msra.mxu0 %v1621
      %1752 = vmatprep.subr.mxu0 0.0
      %1753 = vmatpush1.msra.mxu0 %v1622
      %1754 = vmatprep.subr.mxu0 0.0
      %1755 = vmatpush1.msra.mxu0 %v1623
      %1756 = vmatprep.subr.mxu0 0.0
      %1757 = vmatpush1.msra.mxu0 %v1624
      %1758 = vmatprep.subr.mxu0 0.0
      %1759 = vmatpush1.msra.mxu0 %v1625
      %1760 = vmatprep.mubr.f32.mxu0 %v1561
      %1761 = vmatmul.mubr.f32.gmra.mrb[0].mxu0 %v1560
      %v1762 = vpop.f32.mrb[0].mxu0
      %v1763 = vadd.f32 %v1693, %v1762
      %v1764 = vpop.f32.mrb[0].mxu0
      %1765 = vdwg.mxu0
      %v1766 = vld [vmem:[%s311] sm:$0x1]
      %1768 = vset.pattern.permute.xlu0 2
      %1769 = vperm.xlu0 %1768, %v1766
      %v1770 = vpop.permute.xlu0 %1769
      %v1772 = vlaneseq
      %v1773 = vshrl.u32 %v1772, 7
      %v1774 = vsub.s32 0, %v1773
      %v1775 = vrot.slane %v1770, %v1774
      %v1776 = vadd.f32 %v1763, %v1775
      %v1777 = vadd.f32 %v1776, 0.0001
      %1778 = vset.pattern.permute.xlu0 0
      %1779 = vperm.xlu0 %1778, %v1766
      %v1780 = vpop.permute.xlu0 %1779
      %v1782 = vlaneseq
      %v1783 = vshrl.u32 %v1782, 7
      %v1784 = vsub.s32 0, %v1783
      %v1785 = vrot.slane %v1780, %v1784
      %v1786 = vadd.f32 %v1763, %v1785
      %v1788 = vrot.slane %v1777, 2
      %v1790 = vrcp.pop %v1788
      %v1791 = vmul.f32 %v1786, %v1790
      %v1792 = vmul.f32 %v1791, 1000.0
      %v1793 = vadd.f32 %v1792, 8.0
      %1794 = vset.pattern.permute.xlu0 1
      %1795 = vperm.xlu0 %1794, %v1766
      %v1796 = vpop.permute.xlu0 %1795
      %v1798 = vlaneseq
      %v1799 = vshrl.u32 %v1798, 7
      %v1800 = vsub.s32 0, %v1799
      %v1801 = vrot.slane %v1796, %v1800
      %v1802 = vadd.f32 %v1763, %v1801
      %v1803 = vrot.slane %v1777, 1
      %v1805 = vrcp.pop %v1803
      %v1806 = vmul.f32 %v1802, %v1805
      %v1807 = vmul.f32 %v1806, 1000.0
      %v1808 = vadd.f32 %v1807, 8.0
      %1810 = vset.pattern.permute.xlu0 0
      %1811 = vperm.xlu0 %1810, %v1763
      %v1812 = vpop.permute.xlu0 %1811
      %v1814 = vsub.f32 %v1763, %v1812
      %v1816 = vrot.slane %v1793, 5
      %v1819 = vrot.slane %v1808, 5
      %vm1821 = vcmask 1042432
      %v1822 = vsel %vm1821, %v1814, %v1816
      %vm1823 = vcmask 1043456
      %v1824 = vsel %vm1823, %v1822, %v1819
      %1825 = vst [vmem:[%s320] sm:$0x1f] %v1824
      %v1826 = vsub.f32 %v1558, %v1812
      %v1827 = vsub.f32 %v1559, %v1812
      %v1828 = vsub.f32 %v1560, %v1812
      %v1829 = vsub.f32 %v1561, %v1812
      %v1834 = vcombine.low %v1826, %v1827
      %v1835 = vcombine.low %v1828, %v1829
      %1838 = vst [vmem:[%s316] sm:$0x77] %v1834
      %1839 = vst [vmem:[%s316 + $0x8] sm:$0x77] %v1835
      %p1840 = scmp.lt.s32.totalorder %s19, 1
      %s1841 = scalar_select %p1840, %s19, 1
      %s1842 = smul.addr %s1841, 4
      %s1843 = smul.addr %s1842, 4
      %s1844 = scalar_lea.vmem %s6, %s1843
      %p1845 = scmp.lt.s32.totalorder %s19, 1
      %s1846 = scalar_select %p1845, %s19, 1
      %s1847 = smul.addr %s1846, 8
      %s1848 = scalar_lea.vmem %s7, %s1847
      // Predicated region
      $region45: #{model_forward.3} parent=43 // pred_check
        %p1849 = pneg %p178
      $region46: #{model_forward.3} parent=43 // pred_check_branch
        %1851 = sbr.rel (%p1849) target = $region48
      $region47: #{model_forward.3} parent=43 // pred_region
        _
      $region48: #{model_forward.3} parent=43 // pred_fallthru
        _
      // Predicated region
      $region49: #{model_forward.3} parent=43 // pred_check
        %p1852 = pneg %p204
      $region50: #{model_forward.3} parent=43 // pred_check_branch
        %1854 = sbr.rel (%p1852) target = $region52
      $region51: #{model_forward.3} parent=43 // pred_region
        _
      $region52: #{model_forward.3} parent=43 // pred_fallthru
        _
    $region44: #{model_forward.3} parent=5 // pred_fallthru
      _
    %p1855 = scmp.le.s32.totalorder 2, %s14
    // Predicated region
    $region53: #{model_forward.3} parent=5 // pred_check
      %p1856 = pneg %p1855
    $region54: #{model_forward.3} parent=5 // pred_check_branch
      %1858 = sbr.rel (%p1856) target = $region56
    $region55: #{model_forward.3} parent=5 // pred_region
      %s1859 = ssub.s32 %s14, 2
      // Predicated region
      $region57: #{model_forward.3} parent=55 // pred_check
        %p1860 = pneg %p184
      $region58: #{model_forward.3} parent=55 // pred_check_branch
        %1862 = sbr.rel (%p1860) target = $region60
      $region59: #{model_forward.3} parent=55 // pred_region
        %p1863 = scmp.lt.s32.totalorder %s20, 1
        %s1864 = scalar_select %p1863, %s20, 1
        %s1865 = smul.addr %s1864, 4
        %s1866 = smul.addr %s1865, 4
        %s1867 = scalar_lea.vmem %s6, %s1866
      $region60: #{model_forward.3} parent=55 // pred_fallthru
        _
      // Predicated region
      $region61: #{model_forward.3} parent=55 // pred_check
        %p1868 = pneg %p210
      $region62: #{model_forward.3} parent=55 // pred_check_branch
        %1870 = sbr.rel (%p1868) target = $region64
      $region63: #{model_forward.3} parent=55 // pred_region
        %p1871 = scmp.lt.s32.totalorder %s20, 1
        %s1872 = scalar_select %p1871, %s20, 1
        %s1873 = smul.addr %s1872, 8
        %s1874 = scalar_lea.vmem %s7, %s1873
      $region64: #{model_forward.3} parent=55 // pred_fallthru
        _
    $region56: #{model_forward.3} parent=5 // pred_fallthru
      _
  $region6: #{model_forward.3} parent=0 // loop_footer
    %s18 = sadd.s32 1, %s14
  $region7: #{model_forward.3} parent=0 // loop_footer_branch
    %13 = sbr.rel target = $region3
  $region8: #{model_forward.3} parent=0 // loop_exit
    _

</llo_original>
